<compile_context>
chip_gen: v6e
topology: v6e:2x2x1
jax: 0.10.0
libtpu: 0.0.40
codegen_flags: <defaults>
</compile_context>

<pallas_src>
import jax
import jax.numpy as jnp
from jax import lax
from jax.experimental import pallas as pl
from jax.experimental.pallas import tpu as pltpu

MODEL_DIM = 128
NUM_HEADS = 2           # head split is a no-op for the value path when seq_len == 1
FF_DIM = 2048           # nn.TransformerEncoderLayer default dim_feedforward
OUT_DIM = 1
EPS = 1e-5              # nn.LayerNorm default eps


def transformer_regressor_kernel(
    x_ref,                       # (TB, Kp)  bf16
    we_ref, be_ref,              # folded emb + seq_len==1 attention: (Kp, D) bf16, (1, D) f32
    g1_ref, bt1_ref,             # layernorm1:  (1, D), (1, D) f32
    w1_ref, b1_ref,              # ffn linear1: (D, FF) bf16, (1, FF) f32
    w2_ref, b2_ref,              # ffn linear2: (FF, D) bf16, (1, D) f32
    g2_ref, bt2_ref,             # layernorm2:  (1, D), (1, D) f32
    wout_ref, bout_ref,          # output head: (1, D) f32 row, (1, 1) f32
    out_ref,                     # (1, 1, TB)  lane-dense output row, f32
):
    bf = jnp.bfloat16

    # input embedding + self-attention (seq_len==1) + residual, all folded into one matmul:
    # weights were combined on the host in f32 (see _prep_weights), so this is exact algebra.
    h = jnp.dot(x_ref[...], we_ref[...], preferred_element_type=jnp.float32) + be_ref[...]

    # LayerNorm 1 (post-norm, norm_first=False), one-pass stats, f32 VPU math
    mu = jnp.mean(h, axis=-1, keepdims=True)
    var = jnp.mean(h * h, axis=-1, keepdims=True) - mu * mu
    h = (h - mu) * lax.rsqrt(var + EPS) * g1_ref[...] + bt1_ref[...]

    # feed-forward: linear2(relu(linear1(h))); bias+ReLU+cast fused so only the bf16 copy of
    # the (TB, FF) intermediate stays live into the second matmul.
    f = jnp.maximum(
        jnp.dot(h.astype(bf), w1_ref[...], preferred_element_type=jnp.float32) + b1_ref[...],
        0.0,
    ).astype(bf)
    h = h + jnp.dot(f, w2_ref[...], preferred_element_type=jnp.float32) + b2_ref[...]

    # LayerNorm 2
    mu = jnp.mean(h, axis=-1, keepdims=True)
    var = jnp.mean(h * h, axis=-1, keepdims=True) - mu * mu
    h = (h - mu) * lax.rsqrt(var + EPS) * g2_ref[...] + bt2_ref[...]

    # output head -> lane-dense (1, TB) row: wout_row @ h^T (contraction fused, no transpose)
    out_row = lax.dot_general(
        wout_ref[...], h, (((1,), (1,)), ((), ())),
        preferred_element_type=jnp.float32,
    ) + bout_ref[...]                                   # (1,1) broadcasts over lanes
    out_ref[...] = out_row.reshape(out_ref.shape).astype(out_ref.dtype)


def init_params(key, input_dim):
    """Deterministic synthetic parameters (same shapes as the PyTorch module, pre-transposed)."""
    ks = jax.random.split(key, 8)
    scale = 0.02
    return {
        "we":   scale * jax.random.normal(ks[0], (input_dim, MODEL_DIM), jnp.float32),
        "be":   scale * jax.random.normal(ks[1], (1, MODEL_DIM), jnp.float32),
        "wv":   scale * jax.random.normal(ks[2], (MODEL_DIM, MODEL_DIM), jnp.float32),
        "bv":   jnp.zeros((1, MODEL_DIM), jnp.float32),
        "wo":   scale * jax.random.normal(ks[3], (MODEL_DIM, MODEL_DIM), jnp.float32),
        "bo":   jnp.zeros((1, MODEL_DIM), jnp.float32),
        "g1":   jnp.ones((1, MODEL_DIM), jnp.float32),
        "bt1":  jnp.zeros((1, MODEL_DIM), jnp.float32),
        "w1":   scale * jax.random.normal(ks[4], (MODEL_DIM, FF_DIM), jnp.float32),
        "b1":   scale * jax.random.normal(ks[5], (1, FF_DIM), jnp.float32),
        "w2":   scale * jax.random.normal(ks[6], (FF_DIM, MODEL_DIM), jnp.float32),
        "b2":   jnp.zeros((1, MODEL_DIM), jnp.float32),
        "g2":   jnp.ones((1, MODEL_DIM), jnp.float32),
        "bt2":  jnp.zeros((1, MODEL_DIM), jnp.float32),
        "wout": scale * jax.random.normal(ks[7], (MODEL_DIM, OUT_DIM), jnp.float32),
        "bout": jnp.zeros((1, OUT_DIM), jnp.float32),
    }


def _prep_weights(params, input_dim, Kp):
    """Fold seq_len==1 attention into the embedding (f32), pad K to Kp, cast matmul weights to bf16."""
    bf = jnp.bfloat16
    D = MODEL_DIM
    # h_post_attn = h + out_proj(v_proj(h)) = h @ (I + wv@wo) + bv@wo + bo  (softmax over 1 key == 1)
    # with h = x @ we + be  =>  fold everything into one (input_dim, D) matmul. f32 precompute.
    m = jnp.eye(D, dtype=jnp.float32) + params["wv"] @ params["wo"]
    we_fold = params["we"] @ m
    be_fold = params["be"] @ m + params["bv"] @ params["wo"] + params["bo"]
    we_fold = jnp.pad(we_fold, ((0, Kp - input_dim), (0, 0))).astype(bf)
    return [
        we_fold, be_fold,
        params["g1"], params["bt1"],
        params["w1"].astype(bf), params["b1"],
        params["w2"].astype(bf), params["b2"],
        params["g2"], params["bt2"],
        params["wout"].T,            # (1, D) f32 row for the lane-dense head
        params["bout"],              # (1, 1) f32
    ]


def _pick_batch_tile(B, block_b):
    """Batch tile: multiple of 128 when B >= 128 (unmasked lane-dense stores), <= 1024, and
    capped near B/2 so big batches always split into >= 2 grid steps (v7x megacore)."""
    if B < 128:
        return int(max(8, pl.cdiv(B, 8) * 8))
    tb = max(128, (min(int(block_b), 1024) // 128) * 128)
    half = int(pl.cdiv(pl.cdiv(B, 2), 128) * 128)
    return int(max(128, min(tb, half)))


def transformer_regressor(x, params, *, block_b=1024, vmem_limit_bytes=48 << 20):
    B, input_dim = x.shape
    D = MODEL_DIM
    Kp = int(pl.cdiv(input_dim, 128) * 128)                # lane-align first matmul's K dim
    tb = _pick_batch_tile(B, block_b)
    Bp = int(pl.cdiv(B, tb) * tb)
    nb = Bp // tb

    # Zero-pad rows to Bp and K to Kp; cast the only per-step HBM stream to bf16 on the host
    # (the matmul already uses bf16 operands, so numerics are unchanged).
    xp = jnp.pad(x, ((0, Bp - B), (0, Kp - input_dim))).astype(jnp.bfloat16)
    weights = _prep_weights(params, input_dim, Kp)

    def full_spec(w):
        # Grid-invariant parameter block; single-buffer it (no point double-buffering a tile
        # whose block index never changes — saves ~1 MiB of VMEM, mostly w1/w2).
        nd = w.ndim
        try:
            return pl.BlockSpec(w.shape, lambda i: (0,) * nd, pipeline_mode=pl.Buffered(1))
        except TypeError:   # older jax without pipeline_mode on BlockSpec
            return pl.BlockSpec(w.shape, lambda i: (0,) * nd)

    in_specs = [pl.BlockSpec((tb, Kp), lambda i: (i, 0))]
    in_specs += [full_spec(w) for w in weights]

    flops = 2 * Bp * (Kp * D + 2 * D * FF_DIM + D)
    bytes_accessed = int(
        xp.size * xp.dtype.itemsize
        + sum(int(w.size) * w.dtype.itemsize for w in weights)
        + Bp * jnp.dtype(jnp.float32).itemsize
    )

    out = pl.pallas_call(
        transformer_regressor_kernel,
        out_shape=jax.ShapeDtypeStruct((nb, 1, tb), jnp.float32),   # lane-dense output rows
        grid=(nb,),
        in_specs=in_specs,
        out_specs=pl.BlockSpec((1, 1, tb), lambda i: (i, 0, 0)),
        compiler_params=pltpu.CompilerParams(
            dimension_semantics=("parallel",),          # shard batch tiles across TCs (v7x)
            vmem_limit_bytes=vmem_limit_bytes,          # v5e default (16 MiB) is too small at tb>=512
        ),
        cost_estimate=pl.CostEstimate(
            flops=flops, transcendentals=0, bytes_accessed=bytes_accessed),
    )(xp, *weights)

    return out.reshape(Bp)[:B].reshape(B, OUT_DIM)


def reference(x, p):
    """Pure-JAX f32 reference mirroring PyTorch eval-mode semantics (seq_len=1)."""
    h = x @ p["we"] + p["be"][0]
    v = h @ p["wv"] + p["bv"][0]
    attn = v @ p["wo"] + p["bo"][0]
    h = h + attn

    def ln(t, g, b):
        mu = t.mean(-1, keepdims=True)
        var = ((t - mu) ** 2).mean(-1, keepdims=True)
        return (t - mu) / jnp.sqrt(var + EPS) * g[0] + b[0]

    h = ln(h, p["g1"], p["bt1"])
    f = jnp.maximum(h @ p["w1"] + p["b1"][0], 0.0)
    f = f @ p["w2"] + p["b2"][0]
    h = ln(h + f, p["g2"], p["bt2"])
    return h @ p["wout"] + p["bout"][0]


if __name__ == "__main__":
    # TODO(synk): dropout layers are identity here (inference semantics); training-mode dropout not modeled.
    B, INPUT_DIM = 2, 16
    key = jax.random.PRNGKey(0)
    kx, kp = jax.random.split(key)
    x = jax.random.normal(kx, (B, INPUT_DIM), jnp.float32)
    params = init_params(kp, INPUT_DIM)

    out = transformer_regressor(x, params)
    out = jax.block_until_ready(out)

    ref = reference(x, params)
    assert out.shape == (B, OUT_DIM)
    assert bool(jnp.all(jnp.isfinite(out)))
    # bf16 matmul operands (f32 accumulate) -> looser tolerance vs. the f32 reference.
    assert jnp.allclose(out, ref, rtol=5e-2, atol=2e-2), (out, ref)
    print("KERNEL_OK")
</pallas_src>

<mosaic_0001>
module attributes {stable_mosaic.version = 11 : i64} {
  func.func @transformer_regressor_kernel(%arg0: i32, %arg1: memref<8x128xbf16, #tpu.memory_space<vmem>>, %arg2: memref<128x128xbf16, #tpu.memory_space<vmem>>, %arg3: memref<1x128xf32, #tpu.memory_space<vmem>>, %arg4: memref<1x128xf32, #tpu.memory_space<vmem>>, %arg5: memref<1x128xf32, #tpu.memory_space<vmem>>, %arg6: memref<128x2048xbf16, #tpu.memory_space<vmem>>, %arg7: memref<1x2048xf32, #tpu.memory_space<vmem>>, %arg8: memref<2048x128xbf16, #tpu.memory_space<vmem>>, %arg9: memref<1x128xf32, #tpu.memory_space<vmem>>, %arg10: memref<1x128xf32, #tpu.memory_space<vmem>>, %arg11: memref<1x128xf32, #tpu.memory_space<vmem>>, %arg12: memref<1x128xf32, #tpu.memory_space<vmem>>, %arg13: memref<1x1xf32, #tpu.memory_space<vmem>>, %arg14: memref<1x1x8xf32, #tpu.memory_space<vmem>>) attributes {dimension_semantics = [#tpu.dimension_semantics<parallel>], iteration_bounds = array<i64: 1>, scalar_prefetch = 0 : i64, scratch_operands = 0 : i64, tpu.core_type = #tpu.core_type<tc>, window_params = [{transform_indices = @transform_0, window_bounds = array<i64: 8, 128>}, {pipeline_mode = #tpu.pipeline_mode<synchronous>, transform_indices = @transform_1, window_bounds = array<i64: 128, 128>}, {pipeline_mode = #tpu.pipeline_mode<synchronous>, transform_indices = @transform_2, window_bounds = array<i64: 1, 128>}, {pipeline_mode = #tpu.pipeline_mode<synchronous>, transform_indices = @transform_3, window_bounds = array<i64: 1, 128>}, {pipeline_mode = #tpu.pipeline_mode<synchronous>, transform_indices = @transform_4, window_bounds = array<i64: 1, 128>}, {pipeline_mode = #tpu.pipeline_mode<synchronous>, transform_indices = @transform_5, window_bounds = array<i64: 128, 2048>}, {pipeline_mode = #tpu.pipeline_mode<synchronous>, transform_indices = @transform_6, window_bounds = array<i64: 1, 2048>}, {pipeline_mode = #tpu.pipeline_mode<synchronous>, transform_indices = @transform_7, window_bounds = array<i64: 2048, 128>}, {pipeline_mode = #tpu.pipeline_mode<synchronous>, transform_indices = @transform_8, window_bounds = array<i64: 1, 128>}, {pipeline_mode = #tpu.pipeline_mode<synchronous>, transform_indices = @transform_9, window_bounds = array<i64: 1, 128>}, {pipeline_mode = #tpu.pipeline_mode<synchronous>, transform_indices = @transform_10, window_bounds = array<i64: 1, 128>}, {pipeline_mode = #tpu.pipeline_mode<synchronous>, transform_indices = @transform_11, window_bounds = array<i64: 1, 128>}, {pipeline_mode = #tpu.pipeline_mode<synchronous>, transform_indices = @transform_12, window_bounds = array<i64: 1, 1>}, {transform_indices = @transform_13, window_bounds = array<i64: 1, 1, 8>}]} {
    %c0 = arith.constant 0 : index
    %c0_0 = arith.constant 0 : index
    %0 = vector.load %arg1[%c0, %c0_0] : memref<8x128xbf16, #tpu.memory_space<vmem>>, vector<8x128xbf16>
    %c0_1 = arith.constant 0 : index
    %c0_2 = arith.constant 0 : index
    %1 = vector.load %arg2[%c0_1, %c0_2] : memref<128x128xbf16, #tpu.memory_space<vmem>>, vector<128x128xbf16>
    %cst = arith.constant dense<0.000000e+00> : vector<8x128xf32>
    %2 = tpu.matmul %0, %1, %cst {dimension_numbers = #tpu.dot_dimension_numbers<[1], [0], [0], [1], [0, 0, 1, 1], [], []>} : vector<8x128xbf16>, vector<128x128xbf16>, vector<8x128xf32> -> vector<8x128xf32>
    %c0_3 = arith.constant 0 : index
    %c0_4 = arith.constant 0 : index
    %3 = vector.load %arg3[%c0_3, %c0_4] : memref<1x128xf32, #tpu.memory_space<vmem>>, vector<1x128xf32>
    %4 = vector.broadcast %3 : vector<1x128xf32> to vector<8x128xf32>
    %5 = arith.addf %2, %4 : vector<8x128xf32>
    %cst_5 = arith.constant dense<0.000000e+00> : vector<8xf32>
    %6 = vector.multi_reduction <add>, %5, %cst_5 [1] : vector<8x128xf32> to vector<8xf32>
    %7 = vector.shape_cast %6 : vector<8xf32> to vector<8x1xf32>
    %cst_6 = arith.constant 1.280000e+02 : f32
    %8 = vector.broadcast %cst_6 : f32 to vector<8x1xf32>
    %9 = arith.divf %7, %8 : vector<8x1xf32>
    %10 = arith.mulf %5, %5 : vector<8x128xf32>
    %cst_7 = arith.constant dense<0.000000e+00> : vector<8xf32>
    %11 = vector.multi_reduction <add>, %10, %cst_7 [1] : vector<8x128xf32> to vector<8xf32>
    %12 = vector.shape_cast %11 : vector<8xf32> to vector<8x1xf32>
    %cst_8 = arith.constant 1.280000e+02 : f32
    %13 = vector.broadcast %cst_8 : f32 to vector<8x1xf32>
    %14 = arith.divf %12, %13 : vector<8x1xf32>
    %15 = arith.mulf %9, %9 : vector<8x1xf32>
    %16 = arith.subf %14, %15 : vector<8x1xf32>
    %17 = vector.broadcast %9 : vector<8x1xf32> to vector<8x128xf32>
    %18 = arith.subf %5, %17 : vector<8x128xf32>
    %cst_9 = arith.constant 9.99999974E-6 : f32
    %19 = vector.broadcast %cst_9 : f32 to vector<8x1xf32>
    %20 = arith.addf %16, %19 : vector<8x1xf32>
    %21 = math.rsqrt %20 : vector<8x1xf32>
    %22 = vector.broadcast %21 : vector<8x1xf32> to vector<8x128xf32>
    %23 = arith.mulf %18, %22 : vector<8x128xf32>
    %c0_10 = arith.constant 0 : index
    %c0_11 = arith.constant 0 : index
    %24 = vector.load %arg4[%c0_10, %c0_11] : memref<1x128xf32, #tpu.memory_space<vmem>>, vector<1x128xf32>
    %25 = vector.broadcast %24 : vector<1x128xf32> to vector<8x128xf32>
    %26 = arith.mulf %23, %25 : vector<8x128xf32>
    %c0_12 = arith.constant 0 : index
    %c0_13 = arith.constant 0 : index
    %27 = vector.load %arg5[%c0_12, %c0_13] : memref<1x128xf32, #tpu.memory_space<vmem>>, vector<1x128xf32>
    %28 = vector.broadcast %27 : vector<1x128xf32> to vector<8x128xf32>
    %29 = arith.addf %26, %28 : vector<8x128xf32>
    %30 = arith.truncf %29 : vector<8x128xf32> to vector<8x128xbf16>
    %c0_14 = arith.constant 0 : index
    %c0_15 = arith.constant 0 : index
    %31 = vector.load %arg6[%c0_14, %c0_15] : memref<128x2048xbf16, #tpu.memory_space<vmem>>, vector<128x2048xbf16>
    %cst_16 = arith.constant dense<0.000000e+00> : vector<8x2048xf32>
    %32 = tpu.matmul %30, %31, %cst_16 {dimension_numbers = #tpu.dot_dimension_numbers<[1], [0], [0], [1], [0, 0, 1, 1], [], []>} : vector<8x128xbf16>, vector<128x2048xbf16>, vector<8x2048xf32> -> vector<8x2048xf32>
    %c0_17 = arith.constant 0 : index
    %c0_18 = arith.constant 0 : index
    %33 = vector.load %arg7[%c0_17, %c0_18] : memref<1x2048xf32, #tpu.memory_space<vmem>>, vector<1x2048xf32>
    %34 = vector.broadcast %33 : vector<1x2048xf32> to vector<8x2048xf32>
    %35 = arith.addf %32, %34 : vector<8x2048xf32>
    %cst_19 = arith.constant 0.000000e+00 : f32
    %36 = vector.broadcast %cst_19 : f32 to vector<8x2048xf32>
    %37 = arith.maximumf %35, %36 : vector<8x2048xf32>
    %38 = arith.truncf %37 : vector<8x2048xf32> to vector<8x2048xbf16>
    %c0_20 = arith.constant 0 : index
    %c0_21 = arith.constant 0 : index
    %39 = vector.load %arg8[%c0_20, %c0_21] : memref<2048x128xbf16, #tpu.memory_space<vmem>>, vector<2048x128xbf16>
    %cst_22 = arith.constant dense<0.000000e+00> : vector<8x128xf32>
    %40 = tpu.matmul %38, %39, %cst_22 {dimension_numbers = #tpu.dot_dimension_numbers<[1], [0], [0], [1], [0, 0, 1, 1], [], []>} : vector<8x2048xbf16>, vector<2048x128xbf16>, vector<8x128xf32> -> vector<8x128xf32>
    %41 = arith.addf %29, %40 : vector<8x128xf32>
    %c0_23 = arith.constant 0 : index
    %c0_24 = arith.constant 0 : index
    %42 = vector.load %arg9[%c0_23, %c0_24] : memref<1x128xf32, #tpu.memory_space<vmem>>, vector<1x128xf32>
    %43 = vector.broadcast %42 : vector<1x128xf32> to vector<8x128xf32>
    %44 = arith.addf %41, %43 : vector<8x128xf32>
    %cst_25 = arith.constant dense<0.000000e+00> : vector<8xf32>
    %45 = vector.multi_reduction <add>, %44, %cst_25 [1] : vector<8x128xf32> to vector<8xf32>
    %46 = vector.shape_cast %45 : vector<8xf32> to vector<8x1xf32>
    %cst_26 = arith.constant 1.280000e+02 : f32
    %47 = vector.broadcast %cst_26 : f32 to vector<8x1xf32>
    %48 = arith.divf %46, %47 : vector<8x1xf32>
    %49 = arith.mulf %44, %44 : vector<8x128xf32>
    %cst_27 = arith.constant dense<0.000000e+00> : vector<8xf32>
    %50 = vector.multi_reduction <add>, %49, %cst_27 [1] : vector<8x128xf32> to vector<8xf32>
    %51 = vector.shape_cast %50 : vector<8xf32> to vector<8x1xf32>
    %cst_28 = arith.constant 1.280000e+02 : f32
    %52 = vector.broadcast %cst_28 : f32 to vector<8x1xf32>
    %53 = arith.divf %51, %52 : vector<8x1xf32>
    %54 = arith.mulf %48, %48 : vector<8x1xf32>
    %55 = arith.subf %53, %54 : vector<8x1xf32>
    %56 = vector.broadcast %48 : vector<8x1xf32> to vector<8x128xf32>
    %57 = arith.subf %44, %56 : vector<8x128xf32>
    %cst_29 = arith.constant 9.99999974E-6 : f32
    %58 = vector.broadcast %cst_29 : f32 to vector<8x1xf32>
    %59 = arith.addf %55, %58 : vector<8x1xf32>
    %60 = math.rsqrt %59 : vector<8x1xf32>
    %61 = vector.broadcast %60 : vector<8x1xf32> to vector<8x128xf32>
    %62 = arith.mulf %57, %61 : vector<8x128xf32>
    %c0_30 = arith.constant 0 : index
    %c0_31 = arith.constant 0 : index
    %63 = vector.load %arg10[%c0_30, %c0_31] : memref<1x128xf32, #tpu.memory_space<vmem>>, vector<1x128xf32>
    %64 = vector.broadcast %63 : vector<1x128xf32> to vector<8x128xf32>
    %65 = arith.mulf %62, %64 : vector<8x128xf32>
    %c0_32 = arith.constant 0 : index
    %c0_33 = arith.constant 0 : index
    %66 = vector.load %arg11[%c0_32, %c0_33] : memref<1x128xf32, #tpu.memory_space<vmem>>, vector<1x128xf32>
    %67 = vector.broadcast %66 : vector<1x128xf32> to vector<8x128xf32>
    %68 = arith.addf %65, %67 : vector<8x128xf32>
    %c0_34 = arith.constant 0 : index
    %c0_35 = arith.constant 0 : index
    %69 = vector.load %arg12[%c0_34, %c0_35] : memref<1x128xf32, #tpu.memory_space<vmem>>, vector<1x128xf32>
    %cst_36 = arith.constant dense<0.000000e+00> : vector<1x8xf32>
    %70 = tpu.matmul %69, %68, %cst_36 {dimension_numbers = #tpu.dot_dimension_numbers<[1], [1], [0], [0], [0, 0, 1, 0], [], []>} : vector<1x128xf32>, vector<8x128xf32>, vector<1x8xf32> -> vector<1x8xf32>
    %c0_37 = arith.constant 0 : index
    %c0_38 = arith.constant 0 : index
    %71 = vector.load %arg13[%c0_37, %c0_38] : memref<1x1xf32, #tpu.memory_space<vmem>>, vector<1x1xf32>
    %72 = vector.broadcast %71 : vector<1x1xf32> to vector<1x8xf32>
    %73 = arith.addf %70, %72 : vector<1x8xf32>
    %74 = vector.shape_cast %73 : vector<1x8xf32> to vector<1x1x8xf32>
    %c0_39 = arith.constant 0 : index
    %c0_40 = arith.constant 0 : index
    %c0_41 = arith.constant 0 : index
    %75 = vector.load %arg14[%c0_39, %c0_40, %c0_41] : memref<1x1x8xf32, #tpu.memory_space<vmem>>, vector<1x1x8xf32>
    tpu.vector_store %arg14[%c0_39, %c0_40, %c0_41], %74 {strides = array<i32>} : memref<1x1x8xf32, #tpu.memory_space<vmem>>, vector<1x1x8xf32>,
    return
  }
  func.func @transform_0(%arg0: i32) -> (i32, i32) {
    %c0_i32 = arith.constant 0 : i32
    %c0_i32_0 = arith.constant 0 : i32
    return %arg0, %c0_i32 : i32, i32
  }
  func.func @transform_1(%arg0: i32) -> (i32, i32) {
    %c0_i32 = arith.constant 0 : i32
    %c0_i32_0 = arith.constant 0 : i32
    %c0_i32_1 = arith.constant 0 : i32
    return %c0_i32, %c0_i32_0 : i32, i32
  }
  func.func @transform_2(%arg0: i32) -> (i32, i32) {
    %c0_i32 = arith.constant 0 : i32
    %c0_i32_0 = arith.constant 0 : i32
    %c0_i32_1 = arith.constant 0 : i32
    return %c0_i32, %c0_i32_0 : i32, i32
  }
  func.func @transform_3(%arg0: i32) -> (i32, i32) {
    %c0_i32 = arith.constant 0 : i32
    %c0_i32_0 = arith.constant 0 : i32
    %c0_i32_1 = arith.constant 0 : i32
    return %c0_i32, %c0_i32_0 : i32, i32
  }
  func.func @transform_4(%arg0: i32) -> (i32, i32) {
    %c0_i32 = arith.constant 0 : i32
    %c0_i32_0 = arith.constant 0 : i32
    %c0_i32_1 = arith.constant 0 : i32
    return %c0_i32, %c0_i32_0 : i32, i32
  }
  func.func @transform_5(%arg0: i32) -> (i32, i32) {
    %c0_i32 = arith.constant 0 : i32
    %c0_i32_0 = arith.constant 0 : i32
    %c0_i32_1 = arith.constant 0 : i32
    return %c0_i32, %c0_i32_0 : i32, i32
  }
  func.func @transform_6(%arg0: i32) -> (i32, i32) {
    %c0_i32 = arith.constant 0 : i32
    %c0_i32_0 = arith.constant 0 : i32
    %c0_i32_1 = arith.constant 0 : i32
    return %c0_i32, %c0_i32_0 : i32, i32
  }
  func.func @transform_7(%arg0: i32) -> (i32, i32) {
    %c0_i32 = arith.constant 0 : i32
    %c0_i32_0 = arith.constant 0 : i32
    %c0_i32_1 = arith.constant 0 : i32
    return %c0_i32, %c0_i32_0 : i32, i32
  }
  func.func @transform_8(%arg0: i32) -> (i32, i32) {
    %c0_i32 = arith.constant 0 : i32
    %c0_i32_0 = arith.constant 0 : i32
    %c0_i32_1 = arith.constant 0 : i32
    return %c0_i32, %c0_i32_0 : i32, i32
  }
  func.func @transform_9(%arg0: i32) -> (i32, i32) {
    %c0_i32 = arith.constant 0 : i32
    %c0_i32_0 = arith.constant 0 : i32
    %c0_i32_1 = arith.constant 0 : i32
    return %c0_i32, %c0_i32_0 : i32, i32
  }
  func.func @transform_10(%arg0: i32) -> (i32, i32) {
    %c0_i32 = arith.constant 0 : i32
    %c0_i32_0 = arith.constant 0 : i32
    %c0_i32_1 = arith.constant 0 : i32
    return %c0_i32, %c0_i32_0 : i32, i32
  }
  func.func @transform_11(%arg0: i32) -> (i32, i32) {
    %c0_i32 = arith.constant 0 : i32
    %c0_i32_0 = arith.constant 0 : i32
    %c0_i32_1 = arith.constant 0 : i32
    return %c0_i32, %c0_i32_0 : i32, i32
  }
  func.func @transform_12(%arg0: i32) -> (i32, i32) {
    %c0_i32 = arith.constant 0 : i32
    %c0_i32_0 = arith.constant 0 : i32
    %c0_i32_1 = arith.constant 0 : i32
    return %c0_i32, %c0_i32_0 : i32, i32
  }
  func.func @transform_13(%arg0: i32) -> (i32, i32, i32) {
    %c0_i32 = arith.constant 0 : i32
    %c0_i32_0 = arith.constant 0 : i32
    %c0_i32_1 = arith.constant 0 : i32
    return %arg0, %c0_i32, %c0_i32_0 : i32, i32, i32
  }
}

</mosaic_0001>

<llo_original>
// kernel: tpu_custom_call.1
$region0: #{tpu_custom_call.1}
  #allocation0 [shape = 'u32[]', space=smem, size = 0x4, offset = 0x4, fixed_abs, tag = 'smem constant byte address 0x4 - core index']
  #allocation1 [shape = 'u32[144,128]{1,0:T(1,128)}', space=vmem, size = 0x12000, scoped, tag = 'internal scratch']
  #allocation2 [shape = 'f32[1,1]{1,0:T(1,128)S(1)}', space=vmem, size = 0x200, scoped, tag = 'scoped memory for tpu_custom_call.1']
  %s0 = inlined_call_operand.hbm [shape: bf16[8,128], index: 0, kind: input, shape index: {}]
  %s1 = inlined_call_operand.hbm [shape: bf16[128,128], index: 1, kind: input, shape index: {}]
  %s2 = inlined_call_operand.vmem [shape: f32[1,128], index: 2, kind: input, shape index: {}]
  %s3 = inlined_call_operand.vmem [shape: f32[1,128], index: 3, kind: input, shape index: {}]
  %s4 = inlined_call_operand.vmem [shape: f32[1,128], index: 4, kind: input, shape index: {}]
  %s5 = inlined_call_operand.hbm [shape: bf16[128,2048], index: 5, kind: input, shape index: {}]
  %s6 = inlined_call_operand.hbm [shape: f32[1,2048], index: 6, kind: input, shape index: {}]
  %s7 = inlined_call_operand.hbm [shape: bf16[2048,128], index: 7, kind: input, shape index: {}]
  %s8 = inlined_call_operand.vmem [shape: f32[1,128], index: 8, kind: input, shape index: {}]
  %s9 = inlined_call_operand.vmem [shape: f32[1,128], index: 9, kind: input, shape index: {}]
  %s10 = inlined_call_operand.vmem [shape: f32[1,128], index: 10, kind: input, shape index: {}]
  %s11 = inlined_call_operand.vmem [shape: f32[1,128], index: 11, kind: input, shape index: {}]
  %s12 = inlined_call_operand.<no memory space> [shape: f32[1,1], index: 12, kind: input, shape index: {}]
  %s13 = inlined_call_operand.hbm [shape: f32[1,1,8], index: 13, kind: output, shape index: {}]
  %s14 = sld [smem:[#allocation0]]
  $region82: #{tpu_custom_call.1} parent=0
    _
  %s16 = ssub.s32 1, %s14
  %s17 = scalar_select 0, %s16, %s14
  %v18 = vstv %s12
  %19 = vst [vmem:[#allocation2] sm:$0x1] %v18
  $region1: #{tpu_custom_call.1} parent=0
    #allocation3 [shape = 'u8[2048]{0}', space=vmem, size = 0x800, scoped, tag = 'input window, operand 0, single buffered']
    #allocation4 [shape = 's32[1]{0}', space=sflag, size = 0x4, scoped, tag = 'scoped memory for tpu_custom_call.1']
    #allocation5 [shape = 's32[1]{0}', space=sflag, size = 0x4, scoped, tag = 'scoped memory for tpu_custom_call.1']
    #allocation6 [shape = 'u8[32768]{0}', space=vmem, size = 0x8000, scoped, tag = 'input window, operand 1, single buffered']
    #allocation7 [shape = 's32[1]{0}', space=sflag, size = 0x4, scoped, tag = 'scoped memory for tpu_custom_call.1']
    #allocation8 [shape = 'u8[524288]{0}', space=vmem, size = 0x80000, scoped, tag = 'input window, operand 5, single buffered']
    #allocation9 [shape = 'u8[8192]{0}', space=vmem, size = 0x2000, scoped, tag = 'input window, operand 6, single buffered']
    #allocation10 [shape = 's32[1]{0}', space=sflag, size = 0x4, scoped, tag = 'scoped memory for tpu_custom_call.1']
    #allocation11 [shape = 'u8[524288]{0}', space=vmem, size = 0x80000, scoped, tag = 'input window, operand 7, single buffered']
    #allocation12 [shape = 'u8[512]{0}', space=vmem, size = 0x400, scoped, tag = 'output window, operand 0, single buffered']
    %20 = vsyncpa [#allocation4], 0
    %21 = vsyncpa [#allocation7], 0
    %22 = vsyncpa [#allocation10], 0
    %23 = vsyncpa [#allocation5], 0
    // Predicated region
    $region2: #{tpu_custom_call.1} parent=1 // pred_check
      _
    $region3: #{tpu_custom_call.1} parent=1 // pred_check_branch
      %25 = sbr.rel (0) target = $region5
    $region4: #{tpu_custom_call.1} parent=1 // pred_region
      %s27 = ssub.s32 64, 64
      %28 = vsyncadd [#allocation4], %s27
      %s30 = sshll.u32 [#allocation3], 4
      %s31 = int_to_ptr.vmem [resolvable:$true] %s30
      %33 = dma.hbm_to_vmem [thread:$0]  %s0, 64, %s31, [#allocation4]
    $region5: #{tpu_custom_call.1} parent=1 // pred_fallthru
      _
    // Predicated region
    $region6: #{tpu_custom_call.1} parent=1 // pred_check
      _
    $region7: #{tpu_custom_call.1} parent=1 // pred_check_branch
      %35 = sbr.rel (0) target = $region9
    $region8: #{tpu_custom_call.1} parent=1 // pred_region
      %s37 = ssub.s32 1024, 1024
      %38 = vsyncadd [#allocation7], %s37
      %s39 = sshll.u32 [#allocation6], 4
      %s40 = int_to_ptr.vmem [resolvable:$true] %s39
      %45 = dma.hbm_to_vmem [thread:$0]  %s1, 1024, %s40, [#allocation7], 64, 64, 4
    $region9: #{tpu_custom_call.1} parent=1 // pred_fallthru
      _
    // Predicated region
    $region10: #{tpu_custom_call.1} parent=1 // pred_check
      _
    $region11: #{tpu_custom_call.1} parent=1 // pred_check_branch
      %47 = sbr.rel (0) target = $region13
    $region12: #{tpu_custom_call.1} parent=1 // pred_region
      _
    $region13: #{tpu_custom_call.1} parent=1 // pred_fallthru
      _
    // Predicated region
    $region14: #{tpu_custom_call.1} parent=1 // pred_check
      _
    $region15: #{tpu_custom_call.1} parent=1 // pred_check_branch
      %49 = sbr.rel (0) target = $region17
    $region16: #{tpu_custom_call.1} parent=1 // pred_region
      _
    $region17: #{tpu_custom_call.1} parent=1 // pred_fallthru
      _
    // Predicated region
    $region18: #{tpu_custom_call.1} parent=1 // pred_check
      _
    $region19: #{tpu_custom_call.1} parent=1 // pred_check_branch
      %51 = sbr.rel (0) target = $region21
    $region20: #{tpu_custom_call.1} parent=1 // pred_region
      _
    $region21: #{tpu_custom_call.1} parent=1 // pred_fallthru
      _
    // Predicated region
    $region22: #{tpu_custom_call.1} parent=1 // pred_check
      _
    $region23: #{tpu_custom_call.1} parent=1 // pred_check_branch
      %53 = sbr.rel (0) target = $region25
    $region24: #{tpu_custom_call.1} parent=1 // pred_region
      %s55 = ssub.s32 16384, 16384
      %56 = vsyncadd [#allocation7], %s55
      %s57 = sshll.u32 [#allocation8], 4
      %s58 = int_to_ptr.vmem [resolvable:$true] %s57
      %63 = dma.hbm_to_vmem [thread:$0]  %s5, 16384, %s58, [#allocation7], 1024, 1024, 64
    $region25: #{tpu_custom_call.1} parent=1 // pred_fallthru
      _
    // Predicated region
    $region26: #{tpu_custom_call.1} parent=1 // pred_check
      _
    $region27: #{tpu_custom_call.1} parent=1 // pred_check_branch
      %65 = sbr.rel (0) target = $region29
    $region28: #{tpu_custom_call.1} parent=1 // pred_region
      %s67 = ssub.s32 256, 256
      %68 = vsyncadd [#allocation10], %s67
      %s70 = sshll.u32 [#allocation9], 4
      %s71 = int_to_ptr.vmem [resolvable:$true] %s70
      %73 = dma.hbm_to_vmem [thread:$0]  %s6, 256, %s71, [#allocation10]
    $region29: #{tpu_custom_call.1} parent=1 // pred_fallthru
      _
    // Predicated region
    $region30: #{tpu_custom_call.1} parent=1 // pred_check
      _
    $region31: #{tpu_custom_call.1} parent=1 // pred_check_branch
      %75 = sbr.rel (0) target = $region33
    $region32: #{tpu_custom_call.1} parent=1 // pred_region
      %s77 = ssub.s32 16384, 16384
      %78 = vsyncadd [#allocation10], %s77
      %s79 = sshll.u32 [#allocation11], 4
      %s80 = int_to_ptr.vmem [resolvable:$true] %s79
      %85 = dma.hbm_to_vmem [thread:$0]  %s7, 16384, %s80, [#allocation10], 64, 64, 4
    $region33: #{tpu_custom_call.1} parent=1 // pred_fallthru
      _
    // Predicated region
    $region34: #{tpu_custom_call.1} parent=1 // pred_check
      _
    $region35: #{tpu_custom_call.1} parent=1 // pred_check_branch
      %87 = sbr.rel (0) target = $region37
    $region36: #{tpu_custom_call.1} parent=1 // pred_region
      _
    $region37: #{tpu_custom_call.1} parent=1 // pred_fallthru
      _
    // Predicated region
    $region38: #{tpu_custom_call.1} parent=1 // pred_check
      _
    $region39: #{tpu_custom_call.1} parent=1 // pred_check_branch
      %89 = sbr.rel (0) target = $region41
    $region40: #{tpu_custom_call.1} parent=1 // pred_region
      _
    $region41: #{tpu_custom_call.1} parent=1 // pred_fallthru
      _
    // Predicated region
    $region42: #{tpu_custom_call.1} parent=1 // pred_check
      _
    $region43: #{tpu_custom_call.1} parent=1 // pred_check_branch
      %91 = sbr.rel (0) target = $region45
    $region44: #{tpu_custom_call.1} parent=1 // pred_region
      _
    $region45: #{tpu_custom_call.1} parent=1 // pred_fallthru
      _
    // Predicated region
    $region46: #{tpu_custom_call.1} parent=1 // pred_check
      _
    $region47: #{tpu_custom_call.1} parent=1 // pred_check_branch
      %93 = sbr.rel (0) target = $region49
    $region48: #{tpu_custom_call.1} parent=1 // pred_region
      _
    $region49: #{tpu_custom_call.1} parent=1 // pred_fallthru
      _
    // Predicated region
    $region50: #{tpu_custom_call.1} parent=1 // pred_check
      _
    $region51: #{tpu_custom_call.1} parent=1 // pred_check_branch
      %95 = sbr.rel (0) target = $region53
    $region52: #{tpu_custom_call.1} parent=1 // pred_region
      _
    $region53: #{tpu_custom_call.1} parent=1 // pred_fallthru
      _
    // Predicated region
    $region54: #{tpu_custom_call.1} parent=1 // pred_check
      _
    $region55: #{tpu_custom_call.1} parent=1 // pred_check_branch
      %97 = sbr.rel (0) target = $region57
    $region56: #{tpu_custom_call.1} parent=1 // pred_region
      %98 = dma.done [#allocation4], 64
    $region57: #{tpu_custom_call.1} parent=1 // pred_fallthru
      _
    // Predicated region
    $region58: #{tpu_custom_call.1} parent=1 // pred_check
      _
    $region59: #{tpu_custom_call.1} parent=1 // pred_check_branch
      %100 = sbr.rel (0) target = $region61
    $region60: #{tpu_custom_call.1} parent=1 // pred_region
      %101 = dma.done [#allocation7], 1024
    $region61: #{tpu_custom_call.1} parent=1 // pred_fallthru
      _
    // Predicated region
    $region62: #{tpu_custom_call.1} parent=1 // pred_check
      _
    $region63: #{tpu_custom_call.1} parent=1 // pred_check_branch
      %103 = sbr.rel (0) target = $region65
    $region64: #{tpu_custom_call.1} parent=1 // pred_region
      %104 = dma.done [#allocation7], 16384
    $region65: #{tpu_custom_call.1} parent=1 // pred_fallthru
      _
    // Predicated region
    $region66: #{tpu_custom_call.1} parent=1 // pred_check
      _
    $region67: #{tpu_custom_call.1} parent=1 // pred_check_branch
      %106 = sbr.rel (0) target = $region69
    $region68: #{tpu_custom_call.1} parent=1 // pred_region
      %107 = dma.done [#allocation10], 256
    $region69: #{tpu_custom_call.1} parent=1 // pred_fallthru
      _
    // Predicated region
    $region70: #{tpu_custom_call.1} parent=1 // pred_check
      _
    $region71: #{tpu_custom_call.1} parent=1 // pred_check_branch
      %109 = sbr.rel (0) target = $region73
    $region72: #{tpu_custom_call.1} parent=1 // pred_region
      %110 = dma.done [#allocation10], 16384
    $region73: #{tpu_custom_call.1} parent=1 // pred_fallthru
      _
    %v112 = vld [vmem:[#allocation3] sm:$0xf]
    %v113 = vld [vmem:[#allocation6] sm:$0xf]
    %v114 = vld [vmem:[#allocation6 + $0x4] sm:$0xf]
    %v115 = vld [vmem:[#allocation6 + $0x8] sm:$0xf]
    %v116 = vld [vmem:[#allocation6 + $0xc] sm:$0xf]
    %v117 = vld [vmem:[#allocation6 + $0x10] sm:$0xf]
    %v118 = vld [vmem:[#allocation6 + $0x14] sm:$0xf]
    %v119 = vld [vmem:[#allocation6 + $0x18] sm:$0xf]
    %v120 = vld [vmem:[#allocation6 + $0x1c] sm:$0xf]
    %v121 = vld [vmem:[#allocation6 + $0x20] sm:$0xf]
    %v122 = vld [vmem:[#allocation6 + $0x24] sm:$0xf]
    %v123 = vld [vmem:[#allocation6 + $0x28] sm:$0xf]
    %v124 = vld [vmem:[#allocation6 + $0x2c] sm:$0xf]
    %v125 = vld [vmem:[#allocation6 + $0x30] sm:$0xf]
    %v126 = vld [vmem:[#allocation6 + $0x34] sm:$0xf]
    %v127 = vld [vmem:[#allocation6 + $0x38] sm:$0xf]
    %v128 = vld [vmem:[#allocation6 + $0x3c] sm:$0xf]
    %v129 = vld [vmem:[%s2] sm:$0x1]
    %v131 = vlaneseq
    %v132 = vshrl.u32 %v131, 7
    %v133 = vsub.s32 0, %v132
    %v134 = vrot.slane %v129, %v133
    %v152 = vunpack.c.l.b16 %v113
    %v153 = vunpack.c.l.b16 %v114
    %v154 = vunpack.c.l.b16 %v115
    %v155 = vunpack.c.l.b16 %v116
    %v156 = vunpack.c.l.b16 %v117
    %v157 = vunpack.c.l.b16 %v118
    %v158 = vunpack.c.l.b16 %v119
    %v159 = vunpack.c.l.b16 %v120
    %v160 = vunpack.c.l.b16 %v121
    %v161 = vunpack.c.l.b16 %v122
    %v162 = vunpack.c.l.b16 %v123
    %v163 = vunpack.c.l.b16 %v124
    %v164 = vunpack.c.l.b16 %v125
    %v165 = vunpack.c.l.b16 %v126
    %v166 = vunpack.c.l.b16 %v127
    %v167 = vunpack.c.l.b16 %v128
    %v168 = vpack.c.b16 %v153, %v152
    %v169 = vpack.c.b16 %v155, %v154
    %v170 = vpack.c.b16 %v157, %v156
    %v171 = vpack.c.b16 %v159, %v158
    %v172 = vpack.c.b16 %v161, %v160
    %v173 = vpack.c.b16 %v163, %v162
    %v174 = vpack.c.b16 %v165, %v164
    %v175 = vpack.c.b16 %v167, %v166
    %184 = vmatprep.subr.bf16.mxu0 0
    %185 = vmatpush1.bf16.msra.mxu0 %v175
    %186 = vmatprep.subr.bf16.mxu0 0
    %187 = vmatpush1.bf16.msra.mxu0 %v174
    %188 = vmatprep.subr.bf16.mxu0 0
    %189 = vmatpush1.bf16.msra.mxu0 %v173
    %190 = vmatprep.subr.bf16.mxu0 0
    %191 = vmatpush1.bf16.msra.mxu0 %v172
    %192 = vmatprep.subr.bf16.mxu0 0
    %193 = vmatpush1.bf16.msra.mxu0 %v171
    %194 = vmatprep.subr.bf16.mxu0 0
    %195 = vmatpush1.bf16.msra.mxu0 %v170
    %196 = vmatprep.subr.bf16.mxu0 0
    %197 = vmatpush1.bf16.msra.mxu0 %v169
    %198 = vmatprep.subr.bf16.mxu0 0
    %199 = vmatpush1.bf16.msra.mxu0 %v168
    %200 = vmatprep.subr.bf16.mxu0 0
    %201 = vmatpush2.bf16.msra.mxu0 0
    %202 = vmatprep.subr.bf16.mxu0 0
    %203 = vmatpush2.bf16.msra.mxu0 0
    %204 = vmatprep.subr.bf16.mxu0 0
    %205 = vmatpush2.bf16.msra.mxu0 0
    %206 = vmatprep.subr.bf16.mxu0 0
    %207 = vmatpush2.bf16.msra.mxu0 0
    %208 = vmatprep.subr.bf16.mxu0 0
    %209 = vmatpush2.bf16.msra.mxu0 0
    %210 = vmatprep.subr.bf16.mxu0 0
    %211 = vmatpush2.bf16.msra.mxu0 0
    %212 = vmatprep.subr.bf16.mxu0 0
    %213 = vmatpush2.bf16.msra.mxu0 0
    %214 = vmatprep.subr.bf16.mxu0 0
    %215 = vmatpush2.bf16.msra.mxu0 0
    %216 = vmatprep.mubr.bf16.mxu0 0
    %217 = vmatmul.mubr.bf16.gmra.mxu0 %v112
    %v218 = vpop.f32.mrf.mxu0
    %v219 = vadd.f32 %v134, %v218
    %v220 = vpop.f32.mrf.mxu0
    %v221 = vpop.f32.mrf.mxu0
    %v222 = vpop.f32.mrf.mxu0
    %223 = vdwg.mxu0
    %224 = vadd.xlane.f32.xlu0 %v219
    %v225 = vpop.xlane.xlu0 %224
    %v226 = vrcp.pop 128.0
    %v227 = vmul.f32 %v225, %v226
    %v228 = vmul.f32 %v219, %v219
    %229 = vadd.xlane.f32.xlu0 %v228
    %v230 = vpop.xlane.xlu0 %229
    %v231 = vmul.f32 %v230, %v226
    %v232 = vmul.f32 %v227, %v227
    %v233 = vsub.f32 %v231, %v232
    %v234 = vsub.f32 %v219, %v227
    %v235 = vadd.f32 %v233, 1e-05
    %v236 = vrsqrt.pop %v235
    %v237 = vmul.f32 %v234, %v236
    %v238 = vld [vmem:[%s3] sm:$0x1]
    %v240 = vlaneseq
    %v241 = vshrl.u32 %v240, 7
    %v242 = vsub.s32 0, %v241
    %v243 = vrot.slane %v238, %v242
    %v245 = vmul.f32 %v237, %v243
    %v246 = vld [vmem:[%s4] sm:$0x1]
    %v248 = vlaneseq
    %v249 = vshrl.u32 %v248, 7
    %v250 = vsub.s32 0, %v249
    %v251 = vrot.slane %v246, %v250
    %v253 = vadd.f32 %v245, %v251
    %v254 = vpack.c.bf16 %v253, %v253
    %v255 = vld [vmem:[#allocation8] sm:$0xff]
    %v256 = vld [vmem:[#allocation8 + $0x8] sm:$0xff]
    %v257 = vld [vmem:[#allocation8 + $0x10] sm:$0xff]
    %v258 = vld [vmem:[#allocation8 + $0x18] sm:$0xff]
    %v259 = vld [vmem:[#allocation8 + $0x20] sm:$0xff]
    %v260 = vld [vmem:[#allocation8 + $0x28] sm:$0xff]
    %v261 = vld [vmem:[#allocation8 + $0x30] sm:$0xff]
    %v262 = vld [vmem:[#allocation8 + $0x38] sm:$0xff]
    %v263 = vld [vmem:[#allocation8 + $0x40] sm:$0xff]
    %v264 = vld [vmem:[#allocation8 + $0x48] sm:$0xff]
    %v265 = vld [vmem:[#allocation8 + $0x50] sm:$0xff]
    %v266 = vld [vmem:[#allocation8 + $0x58] sm:$0xff]
    %v267 = vld [vmem:[#allocation8 + $0x60] sm:$0xff]
    %v268 = vld [vmem:[#allocation8 + $0x68] sm:$0xff]
    %v269 = vld [vmem:[#allocation8 + $0x70] sm:$0xff]
    %v270 = vld [vmem:[#allocation8 + $0x78] sm:$0xff]
    %v271 = vld [vmem:[#allocation8 + $0x80] sm:$0xff]
    %v272 = vld [vmem:[#allocation8 + $0x88] sm:$0xff]
    %v273 = vld [vmem:[#allocation8 + $0x90] sm:$0xff]
    %v274 = vld [vmem:[#allocation8 + $0x98] sm:$0xff]
    %v275 = vld [vmem:[#allocation8 + $0xa0] sm:$0xff]
    %v276 = vld [vmem:[#allocation8 + $0xa8] sm:$0xff]
    %v277 = vld [vmem:[#allocation8 + $0xb0] sm:$0xff]
    %v278 = vld [vmem:[#allocation8 + $0xb8] sm:$0xff]
    %v279 = vld [vmem:[#allocation8 + $0xc0] sm:$0xff]
    %v280 = vld [vmem:[#allocation8 + $0xc8] sm:$0xff]
    %v281 = vld [vmem:[#allocation8 + $0xd0] sm:$0xff]
    %v282 = vld [vmem:[#allocation8 + $0xd8] sm:$0xff]
    %v283 = vld [vmem:[#allocation8 + $0xe0] sm:$0xff]
    %v284 = vld [vmem:[#allocation8 + $0xe8] sm:$0xff]
    %v285 = vld [vmem:[#allocation8 + $0xf0] sm:$0xff]
    %v286 = vld [vmem:[#allocation8 + $0xf8] sm:$0xff]
    %v287 = vld [vmem:[#allocation8 + $0x100] sm:$0xff]
    %v288 = vld [vmem:[#allocation8 + $0x108] sm:$0xff]
    %v289 = vld [vmem:[#allocation8 + $0x110] sm:$0xff]
    %v290 = vld [vmem:[#allocation8 + $0x118] sm:$0xff]
    %v291 = vld [vmem:[#allocation8 + $0x120] sm:$0xff]
    %v292 = vld [vmem:[#allocation8 + $0x128] sm:$0xff]
    %v293 = vld [vmem:[#allocation8 + $0x130] sm:$0xff]
    %v294 = vld [vmem:[#allocation8 + $0x138] sm:$0xff]
    %v295 = vld [vmem:[#allocation8 + $0x140] sm:$0xff]
    %v296 = vld [vmem:[#allocation8 + $0x148] sm:$0xff]
    %v297 = vld [vmem:[#allocation8 + $0x150] sm:$0xff]
    %v298 = vld [vmem:[#allocation8 + $0x158] sm:$0xff]
    %v299 = vld [vmem:[#allocation8 + $0x160] sm:$0xff]
    %v300 = vld [vmem:[#allocation8 + $0x168] sm:$0xff]
    %v301 = vld [vmem:[#allocation8 + $0x170] sm:$0xff]
    %v302 = vld [vmem:[#allocation8 + $0x178] sm:$0xff]
    %v303 = vld [vmem:[#allocation8 + $0x180] sm:$0xff]
    %v304 = vld [vmem:[#allocation8 + $0x188] sm:$0xff]
    %v305 = vld [vmem:[#allocation8 + $0x190] sm:$0xff]
    %v306 = vld [vmem:[#allocation8 + $0x198] sm:$0xff]
    %v307 = vld [vmem:[#allocation8 + $0x1a0] sm:$0xff]
    %v308 = vld [vmem:[#allocation8 + $0x1a8] sm:$0xff]
    %v309 = vld [vmem:[#allocation8 + $0x1b0] sm:$0xff]
    %v310 = vld [vmem:[#allocation8 + $0x1b8] sm:$0xff]
    %v311 = vld [vmem:[#allocation8 + $0x1c0] sm:$0xff]
    %v312 = vld [vmem:[#allocation8 + $0x1c8] sm:$0xff]
    %v313 = vld [vmem:[#allocation8 + $0x1d0] sm:$0xff]
    %v314 = vld [vmem:[#allocation8 + $0x1d8] sm:$0xff]
    %v315 = vld [vmem:[#allocation8 + $0x1e0] sm:$0xff]
    %v316 = vld [vmem:[#allocation8 + $0x1e8] sm:$0xff]
    %v317 = vld [vmem:[#allocation8 + $0x1f0] sm:$0xff]
    %v318 = vld [vmem:[#allocation8 + $0x1f8] sm:$0xff]
    %v319 = vld [vmem:[#allocation8 + $0x200] sm:$0xff]
    %v320 = vld [vmem:[#allocation8 + $0x208] sm:$0xff]
    %v321 = vld [vmem:[#allocation8 + $0x210] sm:$0xff]
    %v322 = vld [vmem:[#allocation8 + $0x218] sm:$0xff]
    %v323 = vld [vmem:[#allocation8 + $0x220] sm:$0xff]
    %v324 = vld [vmem:[#allocation8 + $0x228] sm:$0xff]
    %v325 = vld [vmem:[#allocation8 + $0x230] sm:$0xff]
    %v326 = vld [vmem:[#allocation8 + $0x238] sm:$0xff]
    %v327 = vld [vmem:[#allocation8 + $0x240] sm:$0xff]
    %v328 = vld [vmem:[#allocation8 + $0x248] sm:$0xff]
    %v329 = vld [vmem:[#allocation8 + $0x250] sm:$0xff]
    %v330 = vld [vmem:[#allocation8 + $0x258] sm:$0xff]
    %v331 = vld [vmem:[#allocation8 + $0x260] sm:$0xff]
    %v332 = vld [vmem:[#allocation8 + $0x268] sm:$0xff]
    %v333 = vld [vmem:[#allocation8 + $0x270] sm:$0xff]
    %v334 = vld [vmem:[#allocation8 + $0x278] sm:$0xff]
    %v335 = vld [vmem:[#allocation8 + $0x280] sm:$0xff]
    %v336 = vld [vmem:[#allocation8 + $0x288] sm:$0xff]
    %v337 = vld [vmem:[#allocation8 + $0x290] sm:$0xff]
    %v338 = vld [vmem:[#allocation8 + $0x298] sm:$0xff]
    %v339 = vld [vmem:[#allocation8 + $0x2a0] sm:$0xff]
    %v340 = vld [vmem:[#allocation8 + $0x2a8] sm:$0xff]
    %v341 = vld [vmem:[#allocation8 + $0x2b0] sm:$0xff]
    %v342 = vld [vmem:[#allocation8 + $0x2b8] sm:$0xff]
    %v343 = vld [vmem:[#allocation8 + $0x2c0] sm:$0xff]
    %v344 = vld [vmem:[#allocation8 + $0x2c8] sm:$0xff]
    %v345 = vld [vmem:[#allocation8 + $0x2d0] sm:$0xff]
    %v346 = vld [vmem:[#allocation8 + $0x2d8] sm:$0xff]
    %v347 = vld [vmem:[#allocation8 + $0x2e0] sm:$0xff]
    %v348 = vld [vmem:[#allocation8 + $0x2e8] sm:$0xff]
    %v349 = vld [vmem:[#allocation8 + $0x2f0] sm:$0xff]
    %v350 = vld [vmem:[#allocation8 + $0x2f8] sm:$0xff]
    %v351 = vld [vmem:[#allocation8 + $0x300] sm:$0xff]
    %v352 = vld [vmem:[#allocation8 + $0x308] sm:$0xff]
    %v353 = vld [vmem:[#allocation8 + $0x310] sm:$0xff]
    %v354 = vld [vmem:[#allocation8 + $0x318] sm:$0xff]
    %v355 = vld [vmem:[#allocation8 + $0x320] sm:$0xff]
    %v356 = vld [vmem:[#allocation8 + $0x328] sm:$0xff]
    %v357 = vld [vmem:[#allocation8 + $0x330] sm:$0xff]
    %v358 = vld [vmem:[#allocation8 + $0x338] sm:$0xff]
    %v359 = vld [vmem:[#allocation8 + $0x340] sm:$0xff]
    %v360 = vld [vmem:[#allocation8 + $0x348] sm:$0xff]
    %v361 = vld [vmem:[#allocation8 + $0x350] sm:$0xff]
    %v362 = vld [vmem:[#allocation8 + $0x358] sm:$0xff]
    %v363 = vld [vmem:[#allocation8 + $0x360] sm:$0xff]
    %v364 = vld [vmem:[#allocation8 + $0x368] sm:$0xff]
    %v365 = vld [vmem:[#allocation8 + $0x370] sm:$0xff]
    %v366 = vld [vmem:[#allocation8 + $0x378] sm:$0xff]
    %v367 = vld [vmem:[#allocation8 + $0x380] sm:$0xff]
    %v368 = vld [vmem:[#allocation8 + $0x388] sm:$0xff]
    %v369 = vld [vmem:[#allocation8 + $0x390] sm:$0xff]
    %v370 = vld [vmem:[#allocation8 + $0x398] sm:$0xff]
    %v371 = vld [vmem:[#allocation8 + $0x3a0] sm:$0xff]
    %v372 = vld [vmem:[#allocation8 + $0x3a8] sm:$0xff]
    %v373 = vld [vmem:[#allocation8 + $0x3b0] sm:$0xff]
    %v374 = vld [vmem:[#allocation8 + $0x3b8] sm:$0xff]
    %v375 = vld [vmem:[#allocation8 + $0x3c0] sm:$0xff]
    %v376 = vld [vmem:[#allocation8 + $0x3c8] sm:$0xff]
    %v377 = vld [vmem:[#allocation8 + $0x3d0] sm:$0xff]
    %v378 = vld [vmem:[#allocation8 + $0x3d8] sm:$0xff]
    %v379 = vld [vmem:[#allocation8 + $0x3e0] sm:$0xff]
    %v380 = vld [vmem:[#allocation8 + $0x3e8] sm:$0xff]
    %v381 = vld [vmem:[#allocation8 + $0x3f0] sm:$0xff]
    %v382 = vld [vmem:[#allocation8 + $0x3f8] sm:$0xff]
    %v383 = vld [vmem:[#allocation9] sm:$0xff]
    %v384 = vld [vmem:[#allocation9 + $0x8] sm:$0xff]
    %v387 = vlaneseq
    %v388 = vshrl.u32 %v387, 7
    %v389 = vsub.s32 0, %v388
    %v390 = vrot.slane %v383, %v389
    %v391 = vlaneseq
    %v392 = vshrl.u32 %v391, 7
    %v393 = vsub.s32 1, %v392
    %v394 = vrot.slane %v383, %v393
    %v395 = vlaneseq
    %v396 = vshrl.u32 %v395, 7
    %v397 = vsub.s32 2, %v396
    %v398 = vrot.slane %v383, %v397
    %v399 = vlaneseq
    %v400 = vshrl.u32 %v399, 7
    %v401 = vsub.s32 3, %v400
    %v402 = vrot.slane %v383, %v401
    %v403 = vlaneseq
    %v404 = vshrl.u32 %v403, 7
    %v405 = vsub.s32 4, %v404
    %v406 = vrot.slane %v383, %v405
    %v407 = vlaneseq
    %v408 = vshrl.u32 %v407, 7
    %v409 = vsub.s32 5, %v408
    %v410 = vrot.slane %v383, %v409
    %v411 = vlaneseq
    %v412 = vshrl.u32 %v411, 7
    %v413 = vsub.s32 6, %v412
    %v414 = vrot.slane %v383, %v413
    %v415 = vlaneseq
    %v416 = vshrl.u32 %v415, 7
    %v417 = vsub.s32 7, %v416
    %v418 = vrot.slane %v383, %v417
    %v419 = vlaneseq
    %v420 = vshrl.u32 %v419, 7
    %v421 = vsub.s32 0, %v420
    %v422 = vrot.slane %v384, %v421
    %v423 = vlaneseq
    %v424 = vshrl.u32 %v423, 7
    %v425 = vsub.s32 1, %v424
    %v426 = vrot.slane %v384, %v425
    %v427 = vlaneseq
    %v428 = vshrl.u32 %v427, 7
    %v429 = vsub.s32 2, %v428
    %v430 = vrot.slane %v384, %v429
    %v431 = vlaneseq
    %v432 = vshrl.u32 %v431, 7
    %v433 = vsub.s32 3, %v432
    %v434 = vrot.slane %v384, %v433
    %v435 = vlaneseq
    %v436 = vshrl.u32 %v435, 7
    %v437 = vsub.s32 4, %v436
    %v438 = vrot.slane %v384, %v437
    %v439 = vlaneseq
    %v440 = vshrl.u32 %v439, 7
    %v441 = vsub.s32 5, %v440
    %v442 = vrot.slane %v384, %v441
    %v443 = vlaneseq
    %v444 = vshrl.u32 %v443, 7
    %v445 = vsub.s32 6, %v444
    %v446 = vrot.slane %v384, %v445
    %v447 = vlaneseq
    %v448 = vshrl.u32 %v447, 7
    %v449 = vsub.s32 7, %v448
    %v450 = vrot.slane %v384, %v449
    %v595 = vunpack.c.l.b16 %v255
    %v596 = vunpack.c.h.b16 %v255
    %v597 = vunpack.c.l.b16 %v256
    %v598 = vunpack.c.h.b16 %v256
    %v599 = vunpack.c.l.b16 %v257
    %v600 = vunpack.c.h.b16 %v257
    %v601 = vunpack.c.l.b16 %v258
    %v602 = vunpack.c.h.b16 %v258
    %v603 = vunpack.c.l.b16 %v259
    %v604 = vunpack.c.h.b16 %v259
    %v605 = vunpack.c.l.b16 %v260
    %v606 = vunpack.c.h.b16 %v260
    %v607 = vunpack.c.l.b16 %v261
    %v608 = vunpack.c.h.b16 %v261
    %v609 = vunpack.c.l.b16 %v262
    %v610 = vunpack.c.h.b16 %v262
    %v611 = vunpack.c.l.b16 %v263
    %v612 = vunpack.c.h.b16 %v263
    %v613 = vunpack.c.l.b16 %v264
    %v614 = vunpack.c.h.b16 %v264
    %v615 = vunpack.c.l.b16 %v265
    %v616 = vunpack.c.h.b16 %v265
    %v617 = vunpack.c.l.b16 %v266
    %v618 = vunpack.c.h.b16 %v266
    %v619 = vunpack.c.l.b16 %v267
    %v620 = vunpack.c.h.b16 %v267
    %v621 = vunpack.c.l.b16 %v268
    %v622 = vunpack.c.h.b16 %v268
    %v623 = vunpack.c.l.b16 %v269
    %v624 = vunpack.c.h.b16 %v269
    %v625 = vunpack.c.l.b16 %v270
    %v626 = vunpack.c.h.b16 %v270
    %v627 = vunpack.c.l.b16 %v271
    %v628 = vunpack.c.h.b16 %v271
    %v629 = vunpack.c.l.b16 %v272
    %v630 = vunpack.c.h.b16 %v272
    %v631 = vunpack.c.l.b16 %v273
    %v632 = vunpack.c.h.b16 %v273
    %v633 = vunpack.c.l.b16 %v274
    %v634 = vunpack.c.h.b16 %v274
    %v635 = vunpack.c.l.b16 %v275
    %v636 = vunpack.c.h.b16 %v275
    %v637 = vunpack.c.l.b16 %v276
    %v638 = vunpack.c.h.b16 %v276
    %v639 = vunpack.c.l.b16 %v277
    %v640 = vunpack.c.h.b16 %v277
    %v641 = vunpack.c.l.b16 %v278
    %v642 = vunpack.c.h.b16 %v278
    %v643 = vunpack.c.l.b16 %v279
    %v644 = vunpack.c.h.b16 %v279
    %v645 = vunpack.c.l.b16 %v280
    %v646 = vunpack.c.h.b16 %v280
    %v647 = vunpack.c.l.b16 %v281
    %v648 = vunpack.c.h.b16 %v281
    %v649 = vunpack.c.l.b16 %v282
    %v650 = vunpack.c.h.b16 %v282
    %v651 = vunpack.c.l.b16 %v283
    %v652 = vunpack.c.h.b16 %v283
    %v653 = vunpack.c.l.b16 %v284
    %v654 = vunpack.c.h.b16 %v284
    %v655 = vunpack.c.l.b16 %v285
    %v656 = vunpack.c.h.b16 %v285
    %v657 = vunpack.c.l.b16 %v286
    %v658 = vunpack.c.h.b16 %v286
    %v659 = vunpack.c.l.b16 %v287
    %v660 = vunpack.c.h.b16 %v287
    %v661 = vunpack.c.l.b16 %v288
    %v662 = vunpack.c.h.b16 %v288
    %v663 = vunpack.c.l.b16 %v289
    %v664 = vunpack.c.h.b16 %v289
    %v665 = vunpack.c.l.b16 %v290
    %v666 = vunpack.c.h.b16 %v290
    %v667 = vunpack.c.l.b16 %v291
    %v668 = vunpack.c.h.b16 %v291
    %v669 = vunpack.c.l.b16 %v292
    %v670 = vunpack.c.h.b16 %v292
    %v671 = vunpack.c.l.b16 %v293
    %v672 = vunpack.c.h.b16 %v293
    %v673 = vunpack.c.l.b16 %v294
    %v674 = vunpack.c.h.b16 %v294
    %v675 = vunpack.c.l.b16 %v295
    %v676 = vunpack.c.h.b16 %v295
    %v677 = vunpack.c.l.b16 %v296
    %v678 = vunpack.c.h.b16 %v296
    %v679 = vunpack.c.l.b16 %v297
    %v680 = vunpack.c.h.b16 %v297
    %v681 = vunpack.c.l.b16 %v298
    %v682 = vunpack.c.h.b16 %v298
    %v683 = vunpack.c.l.b16 %v299
    %v684 = vunpack.c.h.b16 %v299
    %v685 = vunpack.c.l.b16 %v300
    %v686 = vunpack.c.h.b16 %v300
    %v687 = vunpack.c.l.b16 %v301
    %v688 = vunpack.c.h.b16 %v301
    %v689 = vunpack.c.l.b16 %v302
    %v690 = vunpack.c.h.b16 %v302
    %v691 = vunpack.c.l.b16 %v303
    %v692 = vunpack.c.h.b16 %v303
    %v693 = vunpack.c.l.b16 %v304
    %v694 = vunpack.c.h.b16 %v304
    %v695 = vunpack.c.l.b16 %v305
    %v696 = vunpack.c.h.b16 %v305
    %v697 = vunpack.c.l.b16 %v306
    %v698 = vunpack.c.h.b16 %v306
    %v699 = vunpack.c.l.b16 %v307
    %v700 = vunpack.c.h.b16 %v307
    %v701 = vunpack.c.l.b16 %v308
    %v702 = vunpack.c.h.b16 %v308
    %v703 = vunpack.c.l.b16 %v309
    %v704 = vunpack.c.h.b16 %v309
    %v705 = vunpack.c.l.b16 %v310
    %v706 = vunpack.c.h.b16 %v310
    %v707 = vunpack.c.l.b16 %v311
    %v708 = vunpack.c.h.b16 %v311
    %v709 = vunpack.c.l.b16 %v312
    %v710 = vunpack.c.h.b16 %v312
    %v711 = vunpack.c.l.b16 %v313
    %v712 = vunpack.c.h.b16 %v313
    %v713 = vunpack.c.l.b16 %v314
    %v714 = vunpack.c.h.b16 %v314
    %v715 = vunpack.c.l.b16 %v315
    %v716 = vunpack.c.h.b16 %v315
    %v717 = vunpack.c.l.b16 %v316
    %v718 = vunpack.c.h.b16 %v316
    %v719 = vunpack.c.l.b16 %v317
    %v720 = vunpack.c.h.b16 %v317
    %v721 = vunpack.c.l.b16 %v318
    %v722 = vunpack.c.h.b16 %v318
    %v723 = vunpack.c.l.b16 %v319
    %v724 = vunpack.c.h.b16 %v319
    %v725 = vunpack.c.l.b16 %v320
    %v726 = vunpack.c.h.b16 %v320
    %v727 = vunpack.c.l.b16 %v321
    %v728 = vunpack.c.h.b16 %v321
    %v729 = vunpack.c.l.b16 %v322
    %v730 = vunpack.c.h.b16 %v322
    %v731 = vunpack.c.l.b16 %v323
    %v732 = vunpack.c.h.b16 %v323
    %v733 = vunpack.c.l.b16 %v324
    %v734 = vunpack.c.h.b16 %v324
    %v735 = vunpack.c.l.b16 %v325
    %v736 = vunpack.c.h.b16 %v325
    %v737 = vunpack.c.l.b16 %v326
    %v738 = vunpack.c.h.b16 %v326
    %v739 = vunpack.c.l.b16 %v327
    %v740 = vunpack.c.h.b16 %v327
    %v741 = vunpack.c.l.b16 %v328
    %v742 = vunpack.c.h.b16 %v328
    %v743 = vunpack.c.l.b16 %v329
    %v744 = vunpack.c.h.b16 %v329
    %v745 = vunpack.c.l.b16 %v330
    %v746 = vunpack.c.h.b16 %v330
    %v747 = vunpack.c.l.b16 %v331
    %v748 = vunpack.c.h.b16 %v331
    %v749 = vunpack.c.l.b16 %v332
    %v750 = vunpack.c.h.b16 %v332
    %v751 = vunpack.c.l.b16 %v333
    %v752 = vunpack.c.h.b16 %v333
    %v753 = vunpack.c.l.b16 %v334
    %v754 = vunpack.c.h.b16 %v334
    %v755 = vunpack.c.l.b16 %v335
    %v756 = vunpack.c.h.b16 %v335
    %v757 = vunpack.c.l.b16 %v336
    %v758 = vunpack.c.h.b16 %v336
    %v759 = vunpack.c.l.b16 %v337
    %v760 = vunpack.c.h.b16 %v337
    %v761 = vunpack.c.l.b16 %v338
    %v762 = vunpack.c.h.b16 %v338
    %v763 = vunpack.c.l.b16 %v339
    %v764 = vunpack.c.h.b16 %v339
    %v765 = vunpack.c.l.b16 %v340
    %v766 = vunpack.c.h.b16 %v340
    %v767 = vunpack.c.l.b16 %v341
    %v768 = vunpack.c.h.b16 %v341
    %v769 = vunpack.c.l.b16 %v342
    %v770 = vunpack.c.h.b16 %v342
    %v771 = vunpack.c.l.b16 %v343
    %v772 = vunpack.c.h.b16 %v343
    %v773 = vunpack.c.l.b16 %v344
    %v774 = vunpack.c.h.b16 %v344
    %v775 = vunpack.c.l.b16 %v345
    %v776 = vunpack.c.h.b16 %v345
    %v777 = vunpack.c.l.b16 %v346
    %v778 = vunpack.c.h.b16 %v346
    %v779 = vunpack.c.l.b16 %v347
    %v780 = vunpack.c.h.b16 %v347
    %v781 = vunpack.c.l.b16 %v348
    %v782 = vunpack.c.h.b16 %v348
    %v783 = vunpack.c.l.b16 %v349
    %v784 = vunpack.c.h.b16 %v349
    %v785 = vunpack.c.l.b16 %v350
    %v786 = vunpack.c.h.b16 %v350
    %v787 = vunpack.c.l.b16 %v351
    %v788 = vunpack.c.h.b16 %v351
    %v789 = vunpack.c.l.b16 %v352
    %v790 = vunpack.c.h.b16 %v352
    %v791 = vunpack.c.l.b16 %v353
    %v792 = vunpack.c.h.b16 %v353
    %v793 = vunpack.c.l.b16 %v354
    %v794 = vunpack.c.h.b16 %v354
    %v795 = vunpack.c.l.b16 %v355
    %v796 = vunpack.c.h.b16 %v355
    %v797 = vunpack.c.l.b16 %v356
    %v798 = vunpack.c.h.b16 %v356
    %v799 = vunpack.c.l.b16 %v357
    %v800 = vunpack.c.h.b16 %v357
    %v801 = vunpack.c.l.b16 %v358
    %v802 = vunpack.c.h.b16 %v358
    %v803 = vunpack.c.l.b16 %v359
    %v804 = vunpack.c.h.b16 %v359
    %v805 = vunpack.c.l.b16 %v360
    %v806 = vunpack.c.h.b16 %v360
    %v807 = vunpack.c.l.b16 %v361
    %v808 = vunpack.c.h.b16 %v361
    %v809 = vunpack.c.l.b16 %v362
    %v810 = vunpack.c.h.b16 %v362
    %v811 = vunpack.c.l.b16 %v363
    %v812 = vunpack.c.h.b16 %v363
    %v813 = vunpack.c.l.b16 %v364
    %v814 = vunpack.c.h.b16 %v364
    %v815 = vunpack.c.l.b16 %v365
    %v816 = vunpack.c.h.b16 %v365
    %v817 = vunpack.c.l.b16 %v366
    %v818 = vunpack.c.h.b16 %v366
    %v819 = vunpack.c.l.b16 %v367
    %v820 = vunpack.c.h.b16 %v367
    %v821 = vunpack.c.l.b16 %v368
    %v822 = vunpack.c.h.b16 %v368
    %v823 = vunpack.c.l.b16 %v369
    %v824 = vunpack.c.h.b16 %v369
    %v825 = vunpack.c.l.b16 %v370
    %v826 = vunpack.c.h.b16 %v370
    %v827 = vunpack.c.l.b16 %v371
    %v828 = vunpack.c.h.b16 %v371
    %v829 = vunpack.c.l.b16 %v372
    %v830 = vunpack.c.h.b16 %v372
    %v831 = vunpack.c.l.b16 %v373
    %v832 = vunpack.c.h.b16 %v373
    %v833 = vunpack.c.l.b16 %v374
    %v834 = vunpack.c.h.b16 %v374
    %v835 = vunpack.c.l.b16 %v375
    %v836 = vunpack.c.h.b16 %v375
    %v837 = vunpack.c.l.b16 %v376
    %v838 = vunpack.c.h.b16 %v376
    %v839 = vunpack.c.l.b16 %v377
    %v840 = vunpack.c.h.b16 %v377
    %v841 = vunpack.c.l.b16 %v378
    %v842 = vunpack.c.h.b16 %v378
    %v843 = vunpack.c.l.b16 %v379
    %v844 = vunpack.c.h.b16 %v379
    %v845 = vunpack.c.l.b16 %v380
    %v846 = vunpack.c.h.b16 %v380
    %v847 = vunpack.c.l.b16 %v381
    %v848 = vunpack.c.h.b16 %v381
    %v849 = vunpack.c.l.b16 %v382
    %v850 = vunpack.c.h.b16 %v382
    %v851 = vpack.c.b16 %v611, %v595
    %v852 = vpack.c.b16 %v612, %v596
    %v853 = vpack.c.b16 %v613, %v597
    %v854 = vpack.c.b16 %v614, %v598
    %v855 = vpack.c.b16 %v615, %v599
    %v856 = vpack.c.b16 %v616, %v600
    %v857 = vpack.c.b16 %v617, %v601
    %v858 = vpack.c.b16 %v618, %v602
    %v859 = vpack.c.b16 %v619, %v603
    %v860 = vpack.c.b16 %v620, %v604
    %v861 = vpack.c.b16 %v621, %v605
    %v862 = vpack.c.b16 %v622, %v606
    %v863 = vpack.c.b16 %v623, %v607
    %v864 = vpack.c.b16 %v624, %v608
    %v865 = vpack.c.b16 %v625, %v609
    %v866 = vpack.c.b16 %v626, %v610
    %v867 = vpack.c.b16 %v643, %v627
    %v868 = vpack.c.b16 %v644, %v628
    %v869 = vpack.c.b16 %v645, %v629
    %v870 = vpack.c.b16 %v646, %v630
    %v871 = vpack.c.b16 %v647, %v631
    %v872 = vpack.c.b16 %v648, %v632
    %v873 = vpack.c.b16 %v649, %v633
    %v874 = vpack.c.b16 %v650, %v634
    %v875 = vpack.c.b16 %v651, %v635
    %v876 = vpack.c.b16 %v652, %v636
    %v877 = vpack.c.b16 %v653, %v637
    %v878 = vpack.c.b16 %v654, %v638
    %v879 = vpack.c.b16 %v655, %v639
    %v880 = vpack.c.b16 %v656, %v640
    %v881 = vpack.c.b16 %v657, %v641
    %v882 = vpack.c.b16 %v658, %v642
    %v883 = vpack.c.b16 %v675, %v659
    %v884 = vpack.c.b16 %v676, %v660
    %v885 = vpack.c.b16 %v677, %v661
    %v886 = vpack.c.b16 %v678, %v662
    %v887 = vpack.c.b16 %v679, %v663
    %v888 = vpack.c.b16 %v680, %v664
    %v889 = vpack.c.b16 %v681, %v665
    %v890 = vpack.c.b16 %v682, %v666
    %v891 = vpack.c.b16 %v683, %v667
    %v892 = vpack.c.b16 %v684, %v668
    %v893 = vpack.c.b16 %v685, %v669
    %v894 = vpack.c.b16 %v686, %v670
    %v895 = vpack.c.b16 %v687, %v671
    %v896 = vpack.c.b16 %v688, %v672
    %v897 = vpack.c.b16 %v689, %v673
    %v898 = vpack.c.b16 %v690, %v674
    %v899 = vpack.c.b16 %v707, %v691
    %v900 = vpack.c.b16 %v708, %v692
    %v901 = vpack.c.b16 %v709, %v693
    %v902 = vpack.c.b16 %v710, %v694
    %v903 = vpack.c.b16 %v711, %v695
    %v904 = vpack.c.b16 %v712, %v696
    %v905 = vpack.c.b16 %v713, %v697
    %v906 = vpack.c.b16 %v714, %v698
    %v907 = vpack.c.b16 %v715, %v699
    %v908 = vpack.c.b16 %v716, %v700
    %v909 = vpack.c.b16 %v717, %v701
    %v910 = vpack.c.b16 %v718, %v702
    %v911 = vpack.c.b16 %v719, %v703
    %v912 = vpack.c.b16 %v720, %v704
    %v913 = vpack.c.b16 %v721, %v705
    %v914 = vpack.c.b16 %v722, %v706
    %v915 = vpack.c.b16 %v739, %v723
    %v916 = vpack.c.b16 %v740, %v724
    %v917 = vpack.c.b16 %v741, %v725
    %v918 = vpack.c.b16 %v742, %v726
    %v919 = vpack.c.b16 %v743, %v727
    %v920 = vpack.c.b16 %v744, %v728
    %v921 = vpack.c.b16 %v745, %v729
    %v922 = vpack.c.b16 %v746, %v730
    %v923 = vpack.c.b16 %v747, %v731
    %v924 = vpack.c.b16 %v748, %v732
    %v925 = vpack.c.b16 %v749, %v733
    %v926 = vpack.c.b16 %v750, %v734
    %v927 = vpack.c.b16 %v751, %v735
    %v928 = vpack.c.b16 %v752, %v736
    %v929 = vpack.c.b16 %v753, %v737
    %v930 = vpack.c.b16 %v754, %v738
    %v931 = vpack.c.b16 %v771, %v755
    %v932 = vpack.c.b16 %v772, %v756
    %v933 = vpack.c.b16 %v773, %v757
    %v934 = vpack.c.b16 %v774, %v758
    %v935 = vpack.c.b16 %v775, %v759
    %v936 = vpack.c.b16 %v776, %v760
    %v937 = vpack.c.b16 %v777, %v761
    %v938 = vpack.c.b16 %v778, %v762
    %v939 = vpack.c.b16 %v779, %v763
    %v940 = vpack.c.b16 %v780, %v764
    %v941 = vpack.c.b16 %v781, %v765
    %v942 = vpack.c.b16 %v782, %v766
    %v943 = vpack.c.b16 %v783, %v767
    %v944 = vpack.c.b16 %v784, %v768
    %v945 = vpack.c.b16 %v785, %v769
    %v946 = vpack.c.b16 %v786, %v770
    %v947 = vpack.c.b16 %v803, %v787
    %v948 = vpack.c.b16 %v804, %v788
    %v949 = vpack.c.b16 %v805, %v789
    %v950 = vpack.c.b16 %v806, %v790
    %v951 = vpack.c.b16 %v807, %v791
    %v952 = vpack.c.b16 %v808, %v792
    %v953 = vpack.c.b16 %v809, %v793
    %v954 = vpack.c.b16 %v810, %v794
    %v955 = vpack.c.b16 %v811, %v795
    %v956 = vpack.c.b16 %v812, %v796
    %v957 = vpack.c.b16 %v813, %v797
    %v958 = vpack.c.b16 %v814, %v798
    %v959 = vpack.c.b16 %v815, %v799
    %v960 = vpack.c.b16 %v816, %v800
    %v961 = vpack.c.b16 %v817, %v801
    %v962 = vpack.c.b16 %v818, %v802
    %v963 = vpack.c.b16 %v835, %v819
    %v964 = vpack.c.b16 %v836, %v820
    %v965 = vpack.c.b16 %v837, %v821
    %v966 = vpack.c.b16 %v838, %v822
    %v967 = vpack.c.b16 %v839, %v823
    %v968 = vpack.c.b16 %v840, %v824
    %v969 = vpack.c.b16 %v841, %v825
    %v970 = vpack.c.b16 %v842, %v826
    %v971 = vpack.c.b16 %v843, %v827
    %v972 = vpack.c.b16 %v844, %v828
    %v973 = vpack.c.b16 %v845, %v829
    %v974 = vpack.c.b16 %v846, %v830
    %v975 = vpack.c.b16 %v847, %v831
    %v976 = vpack.c.b16 %v848, %v832
    %v977 = vpack.c.b16 %v849, %v833
    %v978 = vpack.c.b16 %v850, %v834
    %1107 = vmatprep.subr.bf16.mxu0 %v964
    %1108 = vmatpush1.bf16.msra.mxu0 %v963
    %1109 = vmatprep.subr.bf16.mxu0 %v948
    %1110 = vmatpush1.bf16.msra.mxu0 %v947
    %1111 = vmatprep.subr.bf16.mxu0 %v932
    %1112 = vmatpush1.bf16.msra.mxu0 %v931
    %1113 = vmatprep.subr.bf16.mxu0 %v916
    %1114 = vmatpush1.bf16.msra.mxu0 %v915
    %1115 = vmatprep.subr.bf16.mxu0 %v900
    %1116 = vmatpush1.bf16.msra.mxu0 %v899
    %1117 = vmatprep.subr.bf16.mxu0 %v884
    %1118 = vmatpush1.bf16.msra.mxu0 %v883
    %1119 = vmatprep.subr.bf16.mxu0 %v868
    %1120 = vmatpush1.bf16.msra.mxu0 %v867
    %1121 = vmatprep.subr.bf16.mxu0 %v852
    %1122 = vmatpush1.bf16.msra.mxu0 %v851
    %1123 = vmatprep.subr.bf16.mxu0 0
    %1124 = vmatpush2.bf16.msra.mxu0 0
    %1125 = vmatprep.subr.bf16.mxu0 0
    %1126 = vmatpush2.bf16.msra.mxu0 0
    %1127 = vmatprep.subr.bf16.mxu0 0
    %1128 = vmatpush2.bf16.msra.mxu0 0
    %1129 = vmatprep.subr.bf16.mxu0 0
    %1130 = vmatpush2.bf16.msra.mxu0 0
    %1131 = vmatprep.subr.bf16.mxu0 0
    %1132 = vmatpush2.bf16.msra.mxu0 0
    %1133 = vmatprep.subr.bf16.mxu0 0
    %1134 = vmatpush2.bf16.msra.mxu0 0
    %1135 = vmatprep.subr.bf16.mxu0 0
    %1136 = vmatpush2.bf16.msra.mxu0 0
    %1137 = vmatprep.subr.bf16.mxu0 0
    %1138 = vmatpush2.bf16.msra.mxu0 0
    %1139 = vmatprep.mubr.bf16.mxu0 0
    %1140 = vmatmul.mubr.bf16.gmra.mxu0 %v254
    %v1141 = vpop.f32.mrf.mxu0
    %v1142 = vadd.f32 %v390, %v1141
    %v1143 = vpop.f32.mrf.mxu0
    %v1144 = vadd.f32 %v394, %v1143
    %v1145 = vpop.f32.mrf.mxu0
    %v1146 = vpop.f32.mrf.mxu0
    %1147 = vdwg.mxu0
    %1148 = vmatprep.subr.bf16.mxu0 %v966
    %1149 = vmatpush1.bf16.msra.mxu0 %v965
    %1150 = vmatprep.subr.bf16.mxu0 %v950
    %1151 = vmatpush1.bf16.msra.mxu0 %v949
    %1152 = vmatprep.subr.bf16.mxu0 %v934
    %1153 = vmatpush1.bf16.msra.mxu0 %v933
    %1154 = vmatprep.subr.bf16.mxu0 %v918
    %1155 = vmatpush1.bf16.msra.mxu0 %v917
    %1156 = vmatprep.subr.bf16.mxu0 %v902
    %1157 = vmatpush1.bf16.msra.mxu0 %v901
    %1158 = vmatprep.subr.bf16.mxu0 %v886
    %1159 = vmatpush1.bf16.msra.mxu0 %v885
    %1160 = vmatprep.subr.bf16.mxu0 %v870
    %1161 = vmatpush1.bf16.msra.mxu0 %v869
    %1162 = vmatprep.subr.bf16.mxu0 %v854
    %1163 = vmatpush1.bf16.msra.mxu0 %v853
    %1164 = vmatprep.subr.bf16.mxu0 0
    %1165 = vmatpush2.bf16.msra.mxu0 0
    %1166 = vmatprep.subr.bf16.mxu0 0
    %1167 = vmatpush2.bf16.msra.mxu0 0
    %1168 = vmatprep.subr.bf16.mxu0 0
    %1169 = vmatpush2.bf16.msra.mxu0 0
    %1170 = vmatprep.subr.bf16.mxu0 0
    %1171 = vmatpush2.bf16.msra.mxu0 0
    %1172 = vmatprep.subr.bf16.mxu0 0
    %1173 = vmatpush2.bf16.msra.mxu0 0
    %1174 = vmatprep.subr.bf16.mxu0 0
    %1175 = vmatpush2.bf16.msra.mxu0 0
    %1176 = vmatprep.subr.bf16.mxu0 0
    %1177 = vmatpush2.bf16.msra.mxu0 0
    %1178 = vmatprep.subr.bf16.mxu0 0
    %1179 = vmatpush2.bf16.msra.mxu0 0
    %1180 = vmatprep.mubr.bf16.mxu0 0
    %1181 = vmatmul.mubr.bf16.gmra.mxu0 %v254
    %v1182 = vpop.f32.mrf.mxu0
    %v1183 = vadd.f32 %v398, %v1182
    %v1184 = vpop.f32.mrf.mxu0
    %v1185 = vadd.f32 %v402, %v1184
    %v1186 = vpop.f32.mrf.mxu0
    %v1187 = vpop.f32.mrf.mxu0
    %1188 = vdwg.mxu0
    %1189 = vmatprep.subr.bf16.mxu0 %v968
    %1190 = vmatpush1.bf16.msra.mxu0 %v967
    %1191 = vmatprep.subr.bf16.mxu0 %v952
    %1192 = vmatpush1.bf16.msra.mxu0 %v951
    %1193 = vmatprep.subr.bf16.mxu0 %v936
    %1194 = vmatpush1.bf16.msra.mxu0 %v935
    %1195 = vmatprep.subr.bf16.mxu0 %v920
    %1196 = vmatpush1.bf16.msra.mxu0 %v919
    %1197 = vmatprep.subr.bf16.mxu0 %v904
    %1198 = vmatpush1.bf16.msra.mxu0 %v903
    %1199 = vmatprep.subr.bf16.mxu0 %v888
    %1200 = vmatpush1.bf16.msra.mxu0 %v887
    %1201 = vmatprep.subr.bf16.mxu0 %v872
    %1202 = vmatpush1.bf16.msra.mxu0 %v871
    %1203 = vmatprep.subr.bf16.mxu0 %v856
    %1204 = vmatpush1.bf16.msra.mxu0 %v855
    %1205 = vmatprep.subr.bf16.mxu0 0
    %1206 = vmatpush2.bf16.msra.mxu0 0
    %1207 = vmatprep.subr.bf16.mxu0 0
    %1208 = vmatpush2.bf16.msra.mxu0 0
    %1209 = vmatprep.subr.bf16.mxu0 0
    %1210 = vmatpush2.bf16.msra.mxu0 0
    %1211 = vmatprep.subr.bf16.mxu0 0
    %1212 = vmatpush2.bf16.msra.mxu0 0
    %1213 = vmatprep.subr.bf16.mxu0 0
    %1214 = vmatpush2.bf16.msra.mxu0 0
    %1215 = vmatprep.subr.bf16.mxu0 0
    %1216 = vmatpush2.bf16.msra.mxu0 0
    %1217 = vmatprep.subr.bf16.mxu0 0
    %1218 = vmatpush2.bf16.msra.mxu0 0
    %1219 = vmatprep.subr.bf16.mxu0 0
    %1220 = vmatpush2.bf16.msra.mxu0 0
    %1221 = vmatprep.mubr.bf16.mxu0 0
    %1222 = vmatmul.mubr.bf16.gmra.mxu0 %v254
    %v1223 = vpop.f32.mrf.mxu0
    %v1224 = vadd.f32 %v406, %v1223
    %v1225 = vpop.f32.mrf.mxu0
    %v1226 = vadd.f32 %v410, %v1225
    %v1227 = vpop.f32.mrf.mxu0
    %v1228 = vpop.f32.mrf.mxu0
    %1229 = vdwg.mxu0
    %1230 = vmatprep.subr.bf16.mxu0 %v970
    %1231 = vmatpush1.bf16.msra.mxu0 %v969
    %1232 = vmatprep.subr.bf16.mxu0 %v954
    %1233 = vmatpush1.bf16.msra.mxu0 %v953
    %1234 = vmatprep.subr.bf16.mxu0 %v938
    %1235 = vmatpush1.bf16.msra.mxu0 %v937
    %1236 = vmatprep.subr.bf16.mxu0 %v922
    %1237 = vmatpush1.bf16.msra.mxu0 %v921
    %1238 = vmatprep.subr.bf16.mxu0 %v906
    %1239 = vmatpush1.bf16.msra.mxu0 %v905
    %1240 = vmatprep.subr.bf16.mxu0 %v890
    %1241 = vmatpush1.bf16.msra.mxu0 %v889
    %1242 = vmatprep.subr.bf16.mxu0 %v874
    %1243 = vmatpush1.bf16.msra.mxu0 %v873
    %1244 = vmatprep.subr.bf16.mxu0 %v858
    %1245 = vmatpush1.bf16.msra.mxu0 %v857
    %1246 = vmatprep.subr.bf16.mxu0 0
    %1247 = vmatpush2.bf16.msra.mxu0 0
    %1248 = vmatprep.subr.bf16.mxu0 0
    %1249 = vmatpush2.bf16.msra.mxu0 0
    %1250 = vmatprep.subr.bf16.mxu0 0
    %1251 = vmatpush2.bf16.msra.mxu0 0
    %1252 = vmatprep.subr.bf16.mxu0 0
    %1253 = vmatpush2.bf16.msra.mxu0 0
    %1254 = vmatprep.subr.bf16.mxu0 0
    %1255 = vmatpush2.bf16.msra.mxu0 0
    %1256 = vmatprep.subr.bf16.mxu0 0
    %1257 = vmatpush2.bf16.msra.mxu0 0
    %1258 = vmatprep.subr.bf16.mxu0 0
    %1259 = vmatpush2.bf16.msra.mxu0 0
    %1260 = vmatprep.subr.bf16.mxu0 0
    %1261 = vmatpush2.bf16.msra.mxu0 0
    %1262 = vmatprep.mubr.bf16.mxu0 0
    %1263 = vmatmul.mubr.bf16.gmra.mxu0 %v254
    %v1264 = vpop.f32.mrf.mxu0
    %v1265 = vadd.f32 %v414, %v1264
    %v1266 = vpop.f32.mrf.mxu0
    %v1267 = vadd.f32 %v418, %v1266
    %v1268 = vpop.f32.mrf.mxu0
    %v1269 = vpop.f32.mrf.mxu0
    %1270 = vdwg.mxu0
    %1271 = vmatprep.subr.bf16.mxu0 %v972
    %1272 = vmatpush1.bf16.msra.mxu0 %v971
    %1273 = vmatprep.subr.bf16.mxu0 %v956
    %1274 = vmatpush1.bf16.msra.mxu0 %v955
    %1275 = vmatprep.subr.bf16.mxu0 %v940
    %1276 = vmatpush1.bf16.msra.mxu0 %v939
    %1277 = vmatprep.subr.bf16.mxu0 %v924
    %1278 = vmatpush1.bf16.msra.mxu0 %v923
    %1279 = vmatprep.subr.bf16.mxu0 %v908
    %1280 = vmatpush1.bf16.msra.mxu0 %v907
    %1281 = vmatprep.subr.bf16.mxu0 %v892
    %1282 = vmatpush1.bf16.msra.mxu0 %v891
    %1283 = vmatprep.subr.bf16.mxu0 %v876
    %1284 = vmatpush1.bf16.msra.mxu0 %v875
    %1285 = vmatprep.subr.bf16.mxu0 %v860
    %1286 = vmatpush1.bf16.msra.mxu0 %v859
    %1287 = vmatprep.subr.bf16.mxu0 0
    %1288 = vmatpush2.bf16.msra.mxu0 0
    %1289 = vmatprep.subr.bf16.mxu0 0
    %1290 = vmatpush2.bf16.msra.mxu0 0
    %1291 = vmatprep.subr.bf16.mxu0 0
    %1292 = vmatpush2.bf16.msra.mxu0 0
    %1293 = vmatprep.subr.bf16.mxu0 0
    %1294 = vmatpush2.bf16.msra.mxu0 0
    %1295 = vmatprep.subr.bf16.mxu0 0
    %1296 = vmatpush2.bf16.msra.mxu0 0
    %1297 = vmatprep.subr.bf16.mxu0 0
    %1298 = vmatpush2.bf16.msra.mxu0 0
    %1299 = vmatprep.subr.bf16.mxu0 0
    %1300 = vmatpush2.bf16.msra.mxu0 0
    %1301 = vmatprep.subr.bf16.mxu0 0
    %1302 = vmatpush2.bf16.msra.mxu0 0
    %1303 = vmatprep.mubr.bf16.mxu0 0
    %1304 = vmatmul.mubr.bf16.gmra.mxu0 %v254
    %v1305 = vpop.f32.mrf.mxu0
    %v1306 = vadd.f32 %v422, %v1305
    %v1307 = vpop.f32.mrf.mxu0
    %v1308 = vadd.f32 %v426, %v1307
    %v1309 = vpop.f32.mrf.mxu0
    %v1310 = vpop.f32.mrf.mxu0
    %1311 = vdwg.mxu0
    %1312 = vmatprep.subr.bf16.mxu0 %v974
    %1313 = vmatpush1.bf16.msra.mxu0 %v973
    %1314 = vmatprep.subr.bf16.mxu0 %v958
    %1315 = vmatpush1.bf16.msra.mxu0 %v957
    %1316 = vmatprep.subr.bf16.mxu0 %v942
    %1317 = vmatpush1.bf16.msra.mxu0 %v941
    %1318 = vmatprep.subr.bf16.mxu0 %v926
    %1319 = vmatpush1.bf16.msra.mxu0 %v925
    %1320 = vmatprep.subr.bf16.mxu0 %v910
    %1321 = vmatpush1.bf16.msra.mxu0 %v909
    %1322 = vmatprep.subr.bf16.mxu0 %v894
    %1323 = vmatpush1.bf16.msra.mxu0 %v893
    %1324 = vmatprep.subr.bf16.mxu0 %v878
    %1325 = vmatpush1.bf16.msra.mxu0 %v877
    %1326 = vmatprep.subr.bf16.mxu0 %v862
    %1327 = vmatpush1.bf16.msra.mxu0 %v861
    %1328 = vmatprep.subr.bf16.mxu0 0
    %1329 = vmatpush2.bf16.msra.mxu0 0
    %1330 = vmatprep.subr.bf16.mxu0 0
    %1331 = vmatpush2.bf16.msra.mxu0 0
    %1332 = vmatprep.subr.bf16.mxu0 0
    %1333 = vmatpush2.bf16.msra.mxu0 0
    %1334 = vmatprep.subr.bf16.mxu0 0
    %1335 = vmatpush2.bf16.msra.mxu0 0
    %1336 = vmatprep.subr.bf16.mxu0 0
    %1337 = vmatpush2.bf16.msra.mxu0 0
    %1338 = vmatprep.subr.bf16.mxu0 0
    %1339 = vmatpush2.bf16.msra.mxu0 0
    %1340 = vmatprep.subr.bf16.mxu0 0
    %1341 = vmatpush2.bf16.msra.mxu0 0
    %1342 = vmatprep.subr.bf16.mxu0 0
    %1343 = vmatpush2.bf16.msra.mxu0 0
    %1344 = vmatprep.mubr.bf16.mxu0 0
    %1345 = vmatmul.mubr.bf16.gmra.mxu0 %v254
    %v1346 = vpop.f32.mrf.mxu0
    %v1347 = vadd.f32 %v430, %v1346
    %v1348 = vpop.f32.mrf.mxu0
    %v1349 = vadd.f32 %v434, %v1348
    %v1350 = vpop.f32.mrf.mxu0
    %v1351 = vpop.f32.mrf.mxu0
    %1352 = vdwg.mxu0
    %1353 = vmatprep.subr.bf16.mxu0 %v976
    %1354 = vmatpush1.bf16.msra.mxu0 %v975
    %1355 = vmatprep.subr.bf16.mxu0 %v960
    %1356 = vmatpush1.bf16.msra.mxu0 %v959
    %1357 = vmatprep.subr.bf16.mxu0 %v944
    %1358 = vmatpush1.bf16.msra.mxu0 %v943
    %1359 = vmatprep.subr.bf16.mxu0 %v928
    %1360 = vmatpush1.bf16.msra.mxu0 %v927
    %1361 = vmatprep.subr.bf16.mxu0 %v912
    %1362 = vmatpush1.bf16.msra.mxu0 %v911
    %1363 = vmatprep.subr.bf16.mxu0 %v896
    %1364 = vmatpush1.bf16.msra.mxu0 %v895
    %1365 = vmatprep.subr.bf16.mxu0 %v880
    %1366 = vmatpush1.bf16.msra.mxu0 %v879
    %1367 = vmatprep.subr.bf16.mxu0 %v864
    %1368 = vmatpush1.bf16.msra.mxu0 %v863
    %1369 = vmatprep.subr.bf16.mxu0 0
    %1370 = vmatpush2.bf16.msra.mxu0 0
    %1371 = vmatprep.subr.bf16.mxu0 0
    %1372 = vmatpush2.bf16.msra.mxu0 0
    %1373 = vmatprep.subr.bf16.mxu0 0
    %1374 = vmatpush2.bf16.msra.mxu0 0
    %1375 = vmatprep.subr.bf16.mxu0 0
    %1376 = vmatpush2.bf16.msra.mxu0 0
    %1377 = vmatprep.subr.bf16.mxu0 0
    %1378 = vmatpush2.bf16.msra.mxu0 0
    %1379 = vmatprep.subr.bf16.mxu0 0
    %1380 = vmatpush2.bf16.msra.mxu0 0
    %1381 = vmatprep.subr.bf16.mxu0 0
    %1382 = vmatpush2.bf16.msra.mxu0 0
    %1383 = vmatprep.subr.bf16.mxu0 0
    %1384 = vmatpush2.bf16.msra.mxu0 0
    %1385 = vmatprep.mubr.bf16.mxu0 0
    %1386 = vmatmul.mubr.bf16.gmra.mxu0 %v254
    %v1387 = vpop.f32.mrf.mxu0
    %v1388 = vadd.f32 %v438, %v1387
    %v1389 = vpop.f32.mrf.mxu0
    %v1390 = vadd.f32 %v442, %v1389
    %v1391 = vpop.f32.mrf.mxu0
    %v1392 = vpop.f32.mrf.mxu0
    %1393 = vdwg.mxu0
    %1394 = vmatprep.subr.bf16.mxu0 %v978
    %1395 = vmatpush1.bf16.msra.mxu0 %v977
    %1396 = vmatprep.subr.bf16.mxu0 %v962
    %1397 = vmatpush1.bf16.msra.mxu0 %v961
    %1398 = vmatprep.subr.bf16.mxu0 %v946
    %1399 = vmatpush1.bf16.msra.mxu0 %v945
    %1400 = vmatprep.subr.bf16.mxu0 %v930
    %1401 = vmatpush1.bf16.msra.mxu0 %v929
    %1402 = vmatprep.subr.bf16.mxu0 %v914
    %1403 = vmatpush1.bf16.msra.mxu0 %v913
    %1404 = vmatprep.subr.bf16.mxu0 %v898
    %1405 = vmatpush1.bf16.msra.mxu0 %v897
    %1406 = vmatprep.subr.bf16.mxu0 %v882
    %1407 = vmatpush1.bf16.msra.mxu0 %v881
    %1408 = vmatprep.subr.bf16.mxu0 %v866
    %1409 = vmatpush1.bf16.msra.mxu0 %v865
    %1410 = vmatprep.subr.bf16.mxu0 0
    %1411 = vmatpush2.bf16.msra.mxu0 0
    %1412 = vmatprep.subr.bf16.mxu0 0
    %1413 = vmatpush2.bf16.msra.mxu0 0
    %1414 = vmatprep.subr.bf16.mxu0 0
    %1415 = vmatpush2.bf16.msra.mxu0 0
    %1416 = vmatprep.subr.bf16.mxu0 0
    %1417 = vmatpush2.bf16.msra.mxu0 0
    %1418 = vmatprep.subr.bf16.mxu0 0
    %1419 = vmatpush2.bf16.msra.mxu0 0
    %1420 = vmatprep.subr.bf16.mxu0 0
    %1421 = vmatpush2.bf16.msra.mxu0 0
    %1422 = vmatprep.subr.bf16.mxu0 0
    %1423 = vmatpush2.bf16.msra.mxu0 0
    %1424 = vmatprep.subr.bf16.mxu0 0
    %1425 = vmatpush2.bf16.msra.mxu0 0
    %1426 = vmatprep.mubr.bf16.mxu0 0
    %1427 = vmatmul.mubr.bf16.gmra.mxu0 %v254
    %v1428 = vpop.f32.mrf.mxu0
    %v1429 = vadd.f32 %v446, %v1428
    %v1430 = vpop.f32.mrf.mxu0
    %v1431 = vadd.f32 %v450, %v1430
    %v1432 = vpop.f32.mrf.mxu0
    %v1433 = vpop.f32.mrf.mxu0
    %1434 = vdwg.mxu0
    %v1435 = vmax.f32 %v1142, 0.0
    %v1436 = vmax.f32 %v1144, 0.0
    %v1437 = vmax.f32 %v1183, 0.0
    %v1438 = vmax.f32 %v1185, 0.0
    %v1439 = vmax.f32 %v1224, 0.0
    %v1440 = vmax.f32 %v1226, 0.0
    %v1441 = vmax.f32 %v1265, 0.0
    %v1442 = vmax.f32 %v1267, 0.0
    %v1443 = vmax.f32 %v1306, 0.0
    %v1444 = vmax.f32 %v1308, 0.0
    %v1445 = vmax.f32 %v1347, 0.0
    %v1446 = vmax.f32 %v1349, 0.0
    %v1447 = vmax.f32 %v1388, 0.0
    %v1448 = vmax.f32 %v1390, 0.0
    %v1449 = vmax.f32 %v1429, 0.0
    %v1450 = vmax.f32 %v1431, 0.0
    %v1451 = vpack.c.bf16 %v1435, %v1435
    %v1452 = vpack.c.bf16 %v1436, %v1436
    %v1453 = vpack.c.bf16 %v1437, %v1437
    %v1454 = vpack.c.bf16 %v1438, %v1438
    %v1455 = vpack.c.bf16 %v1439, %v1439
    %v1456 = vpack.c.bf16 %v1440, %v1440
    %v1457 = vpack.c.bf16 %v1441, %v1441
    %v1458 = vpack.c.bf16 %v1442, %v1442
    %v1459 = vpack.c.bf16 %v1443, %v1443
    %v1460 = vpack.c.bf16 %v1444, %v1444
    %v1461 = vpack.c.bf16 %v1445, %v1445
    %v1462 = vpack.c.bf16 %v1446, %v1446
    %v1463 = vpack.c.bf16 %v1447, %v1447
    %v1464 = vpack.c.bf16 %v1448, %v1448
    %v1465 = vpack.c.bf16 %v1449, %v1449
    %v1466 = vpack.c.bf16 %v1450, %v1450
    %v1467 = vld [vmem:[#allocation11] sm:$0xf]
    %v1468 = vld [vmem:[#allocation11 + $0x4] sm:$0xf]
    %v1469 = vld [vmem:[#allocation11 + $0x8] sm:$0xf]
    %v1470 = vld [vmem:[#allocation11 + $0xc] sm:$0xf]
    %v1471 = vld [vmem:[#allocation11 + $0x10] sm:$0xf]
    %v1472 = vld [vmem:[#allocation11 + $0x14] sm:$0xf]
    %v1473 = vld [vmem:[#allocation11 + $0x18] sm:$0xf]
    %v1474 = vld [vmem:[#allocation11 + $0x1c] sm:$0xf]
    %v1475 = vld [vmem:[#allocation11 + $0x20] sm:$0xf]
    %v1476 = vld [vmem:[#allocation11 + $0x24] sm:$0xf]
    %v1477 = vld [vmem:[#allocation11 + $0x28] sm:$0xf]
    %v1478 = vld [vmem:[#allocation11 + $0x2c] sm:$0xf]
    %v1479 = vld [vmem:[#allocation11 + $0x30] sm:$0xf]
    %v1480 = vld [vmem:[#allocation11 + $0x34] sm:$0xf]
    %v1481 = vld [vmem:[#allocation11 + $0x38] sm:$0xf]
    %v1482 = vld [vmem:[#allocation11 + $0x3c] sm:$0xf]
    %v1483 = vld [vmem:[#allocation11 + $0x40] sm:$0xf]
    %v1484 = vld [vmem:[#allocation11 + $0x44] sm:$0xf]
    %v1485 = vld [vmem:[#allocation11 + $0x48] sm:$0xf]
    %v1486 = vld [vmem:[#allocation11 + $0x4c] sm:$0xf]
    %v1487 = vld [vmem:[#allocation11 + $0x50] sm:$0xf]
    %v1488 = vld [vmem:[#allocation11 + $0x54] sm:$0xf]
    %v1489 = vld [vmem:[#allocation11 + $0x58] sm:$0xf]
    %v1490 = vld [vmem:[#allocation11 + $0x5c] sm:$0xf]
    %v1491 = vld [vmem:[#allocation11 + $0x60] sm:$0xf]
    %v1492 = vld [vmem:[#allocation11 + $0x64] sm:$0xf]
    %v1493 = vld [vmem:[#allocation11 + $0x68] sm:$0xf]
    %v1494 = vld [vmem:[#allocation11 + $0x6c] sm:$0xf]
    %v1495 = vld [vmem:[#allocation11 + $0x70] sm:$0xf]
    %v1496 = vld [vmem:[#allocation11 + $0x74] sm:$0xf]
    %v1497 = vld [vmem:[#allocation11 + $0x78] sm:$0xf]
    %v1498 = vld [vmem:[#allocation11 + $0x7c] sm:$0xf]
    %v1499 = vld [vmem:[#allocation11 + $0x80] sm:$0xf]
    %v1500 = vld [vmem:[#allocation11 + $0x84] sm:$0xf]
    %v1501 = vld [vmem:[#allocation11 + $0x88] sm:$0xf]
    %v1502 = vld [vmem:[#allocation11 + $0x8c] sm:$0xf]
    %v1503 = vld [vmem:[#allocation11 + $0x90] sm:$0xf]
    %v1504 = vld [vmem:[#allocation11 + $0x94] sm:$0xf]
    %v1505 = vld [vmem:[#allocation11 + $0x98] sm:$0xf]
    %v1506 = vld [vmem:[#allocation11 + $0x9c] sm:$0xf]
    %v1507 = vld [vmem:[#allocation11 + $0xa0] sm:$0xf]
    %v1508 = vld [vmem:[#allocation11 + $0xa4] sm:$0xf]
    %v1509 = vld [vmem:[#allocation11 + $0xa8] sm:$0xf]
    %v1510 = vld [vmem:[#allocation11 + $0xac] sm:$0xf]
    %v1511 = vld [vmem:[#allocation11 + $0xb0] sm:$0xf]
    %v1512 = vld [vmem:[#allocation11 + $0xb4] sm:$0xf]
    %v1513 = vld [vmem:[#allocation11 + $0xb8] sm:$0xf]
    %v1514 = vld [vmem:[#allocation11 + $0xbc] sm:$0xf]
    %v1515 = vld [vmem:[#allocation11 + $0xc0] sm:$0xf]
    %v1516 = vld [vmem:[#allocation11 + $0xc4] sm:$0xf]
    %v1517 = vld [vmem:[#allocation11 + $0xc8] sm:$0xf]
    %v1518 = vld [vmem:[#allocation11 + $0xcc] sm:$0xf]
    %v1519 = vld [vmem:[#allocation11 + $0xd0] sm:$0xf]
    %v1520 = vld [vmem:[#allocation11 + $0xd4] sm:$0xf]
    %v1521 = vld [vmem:[#allocation11 + $0xd8] sm:$0xf]
    %v1522 = vld [vmem:[#allocation11 + $0xdc] sm:$0xf]
    %v1523 = vld [vmem:[#allocation11 + $0xe0] sm:$0xf]
    %v1524 = vld [vmem:[#allocation11 + $0xe4] sm:$0xf]
    %v1525 = vld [vmem:[#allocation11 + $0xe8] sm:$0xf]
    %v1526 = vld [vmem:[#allocation11 + $0xec] sm:$0xf]
    %v1527 = vld [vmem:[#allocation11 + $0xf0] sm:$0xf]
    %v1528 = vld [vmem:[#allocation11 + $0xf4] sm:$0xf]
    %v1529 = vld [vmem:[#allocation11 + $0xf8] sm:$0xf]
    %v1530 = vld [vmem:[#allocation11 + $0xfc] sm:$0xf]
    %v1531 = vld [vmem:[#allocation11 + $0x100] sm:$0xf]
    %v1532 = vld [vmem:[#allocation11 + $0x104] sm:$0xf]
    %v1533 = vld [vmem:[#allocation11 + $0x108] sm:$0xf]
    %v1534 = vld [vmem:[#allocation11 + $0x10c] sm:$0xf]
    %v1535 = vld [vmem:[#allocation11 + $0x110] sm:$0xf]
    %v1536 = vld [vmem:[#allocation11 + $0x114] sm:$0xf]
    %v1537 = vld [vmem:[#allocation11 + $0x118] sm:$0xf]
    %v1538 = vld [vmem:[#allocation11 + $0x11c] sm:$0xf]
    %v1539 = vld [vmem:[#allocation11 + $0x120] sm:$0xf]
    %v1540 = vld [vmem:[#allocation11 + $0x124] sm:$0xf]
    %v1541 = vld [vmem:[#allocation11 + $0x128] sm:$0xf]
    %v1542 = vld [vmem:[#allocation11 + $0x12c] sm:$0xf]
    %v1543 = vld [vmem:[#allocation11 + $0x130] sm:$0xf]
    %v1544 = vld [vmem:[#allocation11 + $0x134] sm:$0xf]
    %v1545 = vld [vmem:[#allocation11 + $0x138] sm:$0xf]
    %v1546 = vld [vmem:[#allocation11 + $0x13c] sm:$0xf]
    %v1547 = vld [vmem:[#allocation11 + $0x140] sm:$0xf]
    %v1548 = vld [vmem:[#allocation11 + $0x144] sm:$0xf]
    %v1549 = vld [vmem:[#allocation11 + $0x148] sm:$0xf]
    %v1550 = vld [vmem:[#allocation11 + $0x14c] sm:$0xf]
    %v1551 = vld [vmem:[#allocation11 + $0x150] sm:$0xf]
    %v1552 = vld [vmem:[#allocation11 + $0x154] sm:$0xf]
    %v1553 = vld [vmem:[#allocation11 + $0x158] sm:$0xf]
    %v1554 = vld [vmem:[#allocation11 + $0x15c] sm:$0xf]
    %v1555 = vld [vmem:[#allocation11 + $0x160] sm:$0xf]
    %v1556 = vld [vmem:[#allocation11 + $0x164] sm:$0xf]
    %v1557 = vld [vmem:[#allocation11 + $0x168] sm:$0xf]
    %v1558 = vld [vmem:[#allocation11 + $0x16c] sm:$0xf]
    %v1559 = vld [vmem:[#allocation11 + $0x170] sm:$0xf]
    %v1560 = vld [vmem:[#allocation11 + $0x174] sm:$0xf]
    %v1561 = vld [vmem:[#allocation11 + $0x178] sm:$0xf]
    %v1562 = vld [vmem:[#allocation11 + $0x17c] sm:$0xf]
    %v1563 = vld [vmem:[#allocation11 + $0x180] sm:$0xf]
    %v1564 = vld [vmem:[#allocation11 + $0x184] sm:$0xf]
    %v1565 = vld [vmem:[#allocation11 + $0x188] sm:$0xf]
    %v1566 = vld [vmem:[#allocation11 + $0x18c] sm:$0xf]
    %v1567 = vld [vmem:[#allocation11 + $0x190] sm:$0xf]
    %v1568 = vld [vmem:[#allocation11 + $0x194] sm:$0xf]
    %v1569 = vld [vmem:[#allocation11 + $0x198] sm:$0xf]
    %v1570 = vld [vmem:[#allocation11 + $0x19c] sm:$0xf]
    %v1571 = vld [vmem:[#allocation11 + $0x1a0] sm:$0xf]
    %v1572 = vld [vmem:[#allocation11 + $0x1a4] sm:$0xf]
    %v1573 = vld [vmem:[#allocation11 + $0x1a8] sm:$0xf]
    %v1574 = vld [vmem:[#allocation11 + $0x1ac] sm:$0xf]
    %v1575 = vld [vmem:[#allocation11 + $0x1b0] sm:$0xf]
    %v1576 = vld [vmem:[#allocation11 + $0x1b4] sm:$0xf]
    %v1577 = vld [vmem:[#allocation11 + $0x1b8] sm:$0xf]
    %v1578 = vld [vmem:[#allocation11 + $0x1bc] sm:$0xf]
    %v1579 = vld [vmem:[#allocation11 + $0x1c0] sm:$0xf]
    %v1580 = vld [vmem:[#allocation11 + $0x1c4] sm:$0xf]
    %v1581 = vld [vmem:[#allocation11 + $0x1c8] sm:$0xf]
    %v1582 = vld [vmem:[#allocation11 + $0x1cc] sm:$0xf]
    %v1583 = vld [vmem:[#allocation11 + $0x1d0] sm:$0xf]
    %v1584 = vld [vmem:[#allocation11 + $0x1d4] sm:$0xf]
    %v1585 = vld [vmem:[#allocation11 + $0x1d8] sm:$0xf]
    %v1586 = vld [vmem:[#allocation11 + $0x1dc] sm:$0xf]
    %v1587 = vld [vmem:[#allocation11 + $0x1e0] sm:$0xf]
    %v1588 = vld [vmem:[#allocation11 + $0x1e4] sm:$0xf]
    %v1589 = vld [vmem:[#allocation11 + $0x1e8] sm:$0xf]
    %v1590 = vld [vmem:[#allocation11 + $0x1ec] sm:$0xf]
    %v1591 = vld [vmem:[#allocation11 + $0x1f0] sm:$0xf]
    %v1592 = vld [vmem:[#allocation11 + $0x1f4] sm:$0xf]
    %v1593 = vld [vmem:[#allocation11 + $0x1f8] sm:$0xf]
    %v1594 = vld [vmem:[#allocation11 + $0x1fc] sm:$0xf]
    %v1595 = vld [vmem:[#allocation11 + $0x200] sm:$0xf]
    %v1596 = vld [vmem:[#allocation11 + $0x204] sm:$0xf]
    %v1597 = vld [vmem:[#allocation11 + $0x208] sm:$0xf]
    %v1598 = vld [vmem:[#allocation11 + $0x20c] sm:$0xf]
    %v1599 = vld [vmem:[#allocation11 + $0x210] sm:$0xf]
    %v1600 = vld [vmem:[#allocation11 + $0x214] sm:$0xf]
    %v1601 = vld [vmem:[#allocation11 + $0x218] sm:$0xf]
    %v1602 = vld [vmem:[#allocation11 + $0x21c] sm:$0xf]
    %v1603 = vld [vmem:[#allocation11 + $0x220] sm:$0xf]
    %v1604 = vld [vmem:[#allocation11 + $0x224] sm:$0xf]
    %v1605 = vld [vmem:[#allocation11 + $0x228] sm:$0xf]
    %v1606 = vld [vmem:[#allocation11 + $0x22c] sm:$0xf]
    %v1607 = vld [vmem:[#allocation11 + $0x230] sm:$0xf]
    %v1608 = vld [vmem:[#allocation11 + $0x234] sm:$0xf]
    %v1609 = vld [vmem:[#allocation11 + $0x238] sm:$0xf]
    %v1610 = vld [vmem:[#allocation11 + $0x23c] sm:$0xf]
    %v1611 = vld [vmem:[#allocation11 + $0x240] sm:$0xf]
    %v1612 = vld [vmem:[#allocation11 + $0x244] sm:$0xf]
    %v1613 = vld [vmem:[#allocation11 + $0x248] sm:$0xf]
    %v1614 = vld [vmem:[#allocation11 + $0x24c] sm:$0xf]
    %v1615 = vld [vmem:[#allocation11 + $0x250] sm:$0xf]
    %v1616 = vld [vmem:[#allocation11 + $0x254] sm:$0xf]
    %v1617 = vld [vmem:[#allocation11 + $0x258] sm:$0xf]
    %v1618 = vld [vmem:[#allocation11 + $0x25c] sm:$0xf]
    %v1619 = vld [vmem:[#allocation11 + $0x260] sm:$0xf]
    %v1620 = vld [vmem:[#allocation11 + $0x264] sm:$0xf]
    %v1621 = vld [vmem:[#allocation11 + $0x268] sm:$0xf]
    %v1622 = vld [vmem:[#allocation11 + $0x26c] sm:$0xf]
    %v1623 = vld [vmem:[#allocation11 + $0x270] sm:$0xf]
    %v1624 = vld [vmem:[#allocation11 + $0x274] sm:$0xf]
    %v1625 = vld [vmem:[#allocation11 + $0x278] sm:$0xf]
    %v1626 = vld [vmem:[#allocation11 + $0x27c] sm:$0xf]
    %v1627 = vld [vmem:[#allocation11 + $0x280] sm:$0xf]
    %v1628 = vld [vmem:[#allocation11 + $0x284] sm:$0xf]
    %v1629 = vld [vmem:[#allocation11 + $0x288] sm:$0xf]
    %v1630 = vld [vmem:[#allocation11 + $0x28c] sm:$0xf]
    %v1631 = vld [vmem:[#allocation11 + $0x290] sm:$0xf]
    %v1632 = vld [vmem:[#allocation11 + $0x294] sm:$0xf]
    %v1633 = vld [vmem:[#allocation11 + $0x298] sm:$0xf]
    %v1634 = vld [vmem:[#allocation11 + $0x29c] sm:$0xf]
    %v1635 = vld [vmem:[#allocation11 + $0x2a0] sm:$0xf]
    %v1636 = vld [vmem:[#allocation11 + $0x2a4] sm:$0xf]
    %v1637 = vld [vmem:[#allocation11 + $0x2a8] sm:$0xf]
    %v1638 = vld [vmem:[#allocation11 + $0x2ac] sm:$0xf]
    %v1639 = vld [vmem:[#allocation11 + $0x2b0] sm:$0xf]
    %v1640 = vld [vmem:[#allocation11 + $0x2b4] sm:$0xf]
    %v1641 = vld [vmem:[#allocation11 + $0x2b8] sm:$0xf]
    %v1642 = vld [vmem:[#allocation11 + $0x2bc] sm:$0xf]
    %v1643 = vld [vmem:[#allocation11 + $0x2c0] sm:$0xf]
    %v1644 = vld [vmem:[#allocation11 + $0x2c4] sm:$0xf]
    %v1645 = vld [vmem:[#allocation11 + $0x2c8] sm:$0xf]
    %v1646 = vld [vmem:[#allocation11 + $0x2cc] sm:$0xf]
    %v1647 = vld [vmem:[#allocation11 + $0x2d0] sm:$0xf]
    %v1648 = vld [vmem:[#allocation11 + $0x2d4] sm:$0xf]
    %v1649 = vld [vmem:[#allocation11 + $0x2d8] sm:$0xf]
    %v1650 = vld [vmem:[#allocation11 + $0x2dc] sm:$0xf]
    %v1651 = vld [vmem:[#allocation11 + $0x2e0] sm:$0xf]
    %v1652 = vld [vmem:[#allocation11 + $0x2e4] sm:$0xf]
    %v1653 = vld [vmem:[#allocation11 + $0x2e8] sm:$0xf]
    %v1654 = vld [vmem:[#allocation11 + $0x2ec] sm:$0xf]
    %v1655 = vld [vmem:[#allocation11 + $0x2f0] sm:$0xf]
    %v1656 = vld [vmem:[#allocation11 + $0x2f4] sm:$0xf]
    %v1657 = vld [vmem:[#allocation11 + $0x2f8] sm:$0xf]
    %v1658 = vld [vmem:[#allocation11 + $0x2fc] sm:$0xf]
    %v1659 = vld [vmem:[#allocation11 + $0x300] sm:$0xf]
    %v1660 = vld [vmem:[#allocation11 + $0x304] sm:$0xf]
    %v1661 = vld [vmem:[#allocation11 + $0x308] sm:$0xf]
    %v1662 = vld [vmem:[#allocation11 + $0x30c] sm:$0xf]
    %v1663 = vld [vmem:[#allocation11 + $0x310] sm:$0xf]
    %v1664 = vld [vmem:[#allocation11 + $0x314] sm:$0xf]
    %v1665 = vld [vmem:[#allocation11 + $0x318] sm:$0xf]
    %v1666 = vld [vmem:[#allocation11 + $0x31c] sm:$0xf]
    %v1667 = vld [vmem:[#allocation11 + $0x320] sm:$0xf]
    %v1668 = vld [vmem:[#allocation11 + $0x324] sm:$0xf]
    %v1669 = vld [vmem:[#allocation11 + $0x328] sm:$0xf]
    %v1670 = vld [vmem:[#allocation11 + $0x32c] sm:$0xf]
    %v1671 = vld [vmem:[#allocation11 + $0x330] sm:$0xf]
    %v1672 = vld [vmem:[#allocation11 + $0x334] sm:$0xf]
    %v1673 = vld [vmem:[#allocation11 + $0x338] sm:$0xf]
    %v1674 = vld [vmem:[#allocation11 + $0x33c] sm:$0xf]
    %v1675 = vld [vmem:[#allocation11 + $0x340] sm:$0xf]
    %v1676 = vld [vmem:[#allocation11 + $0x344] sm:$0xf]
    %v1677 = vld [vmem:[#allocation11 + $0x348] sm:$0xf]
    %v1678 = vld [vmem:[#allocation11 + $0x34c] sm:$0xf]
    %v1679 = vld [vmem:[#allocation11 + $0x350] sm:$0xf]
    %v1680 = vld [vmem:[#allocation11 + $0x354] sm:$0xf]
    %v1681 = vld [vmem:[#allocation11 + $0x358] sm:$0xf]
    %v1682 = vld [vmem:[#allocation11 + $0x35c] sm:$0xf]
    %v1683 = vld [vmem:[#allocation11 + $0x360] sm:$0xf]
    %v1684 = vld [vmem:[#allocation11 + $0x364] sm:$0xf]
    %v1685 = vld [vmem:[#allocation11 + $0x368] sm:$0xf]
    %v1686 = vld [vmem:[#allocation11 + $0x36c] sm:$0xf]
    %v1687 = vld [vmem:[#allocation11 + $0x370] sm:$0xf]
    %v1688 = vld [vmem:[#allocation11 + $0x374] sm:$0xf]
    %v1689 = vld [vmem:[#allocation11 + $0x378] sm:$0xf]
    %v1690 = vld [vmem:[#allocation11 + $0x37c] sm:$0xf]
    %v1691 = vld [vmem:[#allocation11 + $0x380] sm:$0xf]
    %v1692 = vld [vmem:[#allocation11 + $0x384] sm:$0xf]
    %v1693 = vld [vmem:[#allocation11 + $0x388] sm:$0xf]
    %v1694 = vld [vmem:[#allocation11 + $0x38c] sm:$0xf]
    %v1695 = vld [vmem:[#allocation11 + $0x390] sm:$0xf]
    %v1696 = vld [vmem:[#allocation11 + $0x394] sm:$0xf]
    %v1697 = vld [vmem:[#allocation11 + $0x398] sm:$0xf]
    %v1698 = vld [vmem:[#allocation11 + $0x39c] sm:$0xf]
    %v1699 = vld [vmem:[#allocation11 + $0x3a0] sm:$0xf]
    %v1700 = vld [vmem:[#allocation11 + $0x3a4] sm:$0xf]
    %v1701 = vld [vmem:[#allocation11 + $0x3a8] sm:$0xf]
    %v1702 = vld [vmem:[#allocation11 + $0x3ac] sm:$0xf]
    %v1703 = vld [vmem:[#allocation11 + $0x3b0] sm:$0xf]
    %v1704 = vld [vmem:[#allocation11 + $0x3b4] sm:$0xf]
    %v1705 = vld [vmem:[#allocation11 + $0x3b8] sm:$0xf]
    %v1706 = vld [vmem:[#allocation11 + $0x3bc] sm:$0xf]
    %v1707 = vld [vmem:[#allocation11 + $0x3c0] sm:$0xf]
    %v1708 = vld [vmem:[#allocation11 + $0x3c4] sm:$0xf]
    %v1709 = vld [vmem:[#allocation11 + $0x3c8] sm:$0xf]
    %v1710 = vld [vmem:[#allocation11 + $0x3cc] sm:$0xf]
    %v1711 = vld [vmem:[#allocation11 + $0x3d0] sm:$0xf]
    %v1712 = vld [vmem:[#allocation11 + $0x3d4] sm:$0xf]
    %v1713 = vld [vmem:[#allocation11 + $0x3d8] sm:$0xf]
    %v1714 = vld [vmem:[#allocation11 + $0x3dc] sm:$0xf]
    %v1715 = vld [vmem:[#allocation11 + $0x3e0] sm:$0xf]
    %v1716 = vld [vmem:[#allocation11 + $0x3e4] sm:$0xf]
    %v1717 = vld [vmem:[#allocation11 + $0x3e8] sm:$0xf]
    %v1718 = vld [vmem:[#allocation11 + $0x3ec] sm:$0xf]
    %v1719 = vld [vmem:[#allocation11 + $0x3f0] sm:$0xf]
    %v1720 = vld [vmem:[#allocation11 + $0x3f4] sm:$0xf]
    %v1721 = vld [vmem:[#allocation11 + $0x3f8] sm:$0xf]
    %v1722 = vld [vmem:[#allocation11 + $0x3fc] sm:$0xf]
    %v1979 = vunpack.c.l.b16 %v1467
    %v1980 = vunpack.c.l.b16 %v1468
    %v1981 = vunpack.c.l.b16 %v1469
    %v1982 = vunpack.c.l.b16 %v1470
    %v1983 = vunpack.c.l.b16 %v1471
    %v1984 = vunpack.c.l.b16 %v1472
    %v1985 = vunpack.c.l.b16 %v1473
    %v1986 = vunpack.c.l.b16 %v1474
    %v1987 = vunpack.c.l.b16 %v1475
    %v1988 = vunpack.c.l.b16 %v1476
    %v1989 = vunpack.c.l.b16 %v1477
    %v1990 = vunpack.c.l.b16 %v1478
    %v1991 = vunpack.c.l.b16 %v1479
    %v1992 = vunpack.c.l.b16 %v1480
    %v1993 = vunpack.c.l.b16 %v1481
    %v1994 = vunpack.c.l.b16 %v1482
    %v1995 = vunpack.c.l.b16 %v1483
    %v1996 = vunpack.c.l.b16 %v1484
    %v1997 = vunpack.c.l.b16 %v1485
    %v1998 = vunpack.c.l.b16 %v1486
    %v1999 = vunpack.c.l.b16 %v1487
    %v2000 = vunpack.c.l.b16 %v1488
    %v2001 = vunpack.c.l.b16 %v1489
    %v2002 = vunpack.c.l.b16 %v1490
    %v2003 = vunpack.c.l.b16 %v1491
    %v2004 = vunpack.c.l.b16 %v1492
    %v2005 = vunpack.c.l.b16 %v1493
    %v2006 = vunpack.c.l.b16 %v1494
    %v2007 = vunpack.c.l.b16 %v1495
    %v2008 = vunpack.c.l.b16 %v1496
    %v2009 = vunpack.c.l.b16 %v1497
    %v2010 = vunpack.c.l.b16 %v1498
    %v2011 = vunpack.c.l.b16 %v1499
    %v2012 = vunpack.c.l.b16 %v1500
    %v2013 = vunpack.c.l.b16 %v1501
    %v2014 = vunpack.c.l.b16 %v1502
    %v2015 = vunpack.c.l.b16 %v1503
    %v2016 = vunpack.c.l.b16 %v1504
    %v2017 = vunpack.c.l.b16 %v1505
    %v2018 = vunpack.c.l.b16 %v1506
    %v2019 = vunpack.c.l.b16 %v1507
    %v2020 = vunpack.c.l.b16 %v1508
    %v2021 = vunpack.c.l.b16 %v1509
    %v2022 = vunpack.c.l.b16 %v1510
    %v2023 = vunpack.c.l.b16 %v1511
    %v2024 = vunpack.c.l.b16 %v1512
    %v2025 = vunpack.c.l.b16 %v1513
    %v2026 = vunpack.c.l.b16 %v1514
    %v2027 = vunpack.c.l.b16 %v1515
    %v2028 = vunpack.c.l.b16 %v1516
    %v2029 = vunpack.c.l.b16 %v1517
    %v2030 = vunpack.c.l.b16 %v1518
    %v2031 = vunpack.c.l.b16 %v1519
    %v2032 = vunpack.c.l.b16 %v1520
    %v2033 = vunpack.c.l.b16 %v1521
    %v2034 = vunpack.c.l.b16 %v1522
    %v2035 = vunpack.c.l.b16 %v1523
    %v2036 = vunpack.c.l.b16 %v1524
    %v2037 = vunpack.c.l.b16 %v1525
    %v2038 = vunpack.c.l.b16 %v1526
    %v2039 = vunpack.c.l.b16 %v1527
    %v2040 = vunpack.c.l.b16 %v1528
    %v2041 = vunpack.c.l.b16 %v1529
    %v2042 = vunpack.c.l.b16 %v1530
    %v2043 = vunpack.c.l.b16 %v1531
    %v2044 = vunpack.c.l.b16 %v1532
    %v2045 = vunpack.c.l.b16 %v1533
    %v2046 = vunpack.c.l.b16 %v1534
    %v2047 = vunpack.c.l.b16 %v1535
    %v2048 = vunpack.c.l.b16 %v1536
    %v2049 = vunpack.c.l.b16 %v1537
    %v2050 = vunpack.c.l.b16 %v1538
    %v2051 = vunpack.c.l.b16 %v1539
    %v2052 = vunpack.c.l.b16 %v1540
    %v2053 = vunpack.c.l.b16 %v1541
    %v2054 = vunpack.c.l.b16 %v1542
    %v2055 = vunpack.c.l.b16 %v1543
    %v2056 = vunpack.c.l.b16 %v1544
    %v2057 = vunpack.c.l.b16 %v1545
    %v2058 = vunpack.c.l.b16 %v1546
    %v2059 = vunpack.c.l.b16 %v1547
    %v2060 = vunpack.c.l.b16 %v1548
    %v2061 = vunpack.c.l.b16 %v1549
    %v2062 = vunpack.c.l.b16 %v1550
    %v2063 = vunpack.c.l.b16 %v1551
    %v2064 = vunpack.c.l.b16 %v1552
    %v2065 = vunpack.c.l.b16 %v1553
    %v2066 = vunpack.c.l.b16 %v1554
    %v2067 = vunpack.c.l.b16 %v1555
    %v2068 = vunpack.c.l.b16 %v1556
    %v2069 = vunpack.c.l.b16 %v1557
    %v2070 = vunpack.c.l.b16 %v1558
    %v2071 = vunpack.c.l.b16 %v1559
    %v2072 = vunpack.c.l.b16 %v1560
    %v2073 = vunpack.c.l.b16 %v1561
    %v2074 = vunpack.c.l.b16 %v1562
    %v2075 = vunpack.c.l.b16 %v1563
    %v2076 = vunpack.c.l.b16 %v1564
    %v2077 = vunpack.c.l.b16 %v1565
    %v2078 = vunpack.c.l.b16 %v1566
    %v2079 = vunpack.c.l.b16 %v1567
    %v2080 = vunpack.c.l.b16 %v1568
    %v2081 = vunpack.c.l.b16 %v1569
    %v2082 = vunpack.c.l.b16 %v1570
    %v2083 = vunpack.c.l.b16 %v1571
    %v2084 = vunpack.c.l.b16 %v1572
    %v2085 = vunpack.c.l.b16 %v1573
    %v2086 = vunpack.c.l.b16 %v1574
    %v2087 = vunpack.c.l.b16 %v1575
    %v2088 = vunpack.c.l.b16 %v1576
    %v2089 = vunpack.c.l.b16 %v1577
    %v2090 = vunpack.c.l.b16 %v1578
    %v2091 = vunpack.c.l.b16 %v1579
    %v2092 = vunpack.c.l.b16 %v1580
    %v2093 = vunpack.c.l.b16 %v1581
    %v2094 = vunpack.c.l.b16 %v1582
    %v2095 = vunpack.c.l.b16 %v1583
    %v2096 = vunpack.c.l.b16 %v1584
    %v2097 = vunpack.c.l.b16 %v1585
    %v2098 = vunpack.c.l.b16 %v1586
    %v2099 = vunpack.c.l.b16 %v1587
    %v2100 = vunpack.c.l.b16 %v1588
    %v2101 = vunpack.c.l.b16 %v1589
    %v2102 = vunpack.c.l.b16 %v1590
    %v2103 = vunpack.c.l.b16 %v1591
    %v2104 = vunpack.c.l.b16 %v1592
    %v2105 = vunpack.c.l.b16 %v1593
    %v2106 = vunpack.c.l.b16 %v1594
    %v2107 = vunpack.c.l.b16 %v1595
    %v2108 = vunpack.c.l.b16 %v1596
    %v2109 = vunpack.c.l.b16 %v1597
    %v2110 = vunpack.c.l.b16 %v1598
    %v2111 = vunpack.c.l.b16 %v1599
    %v2112 = vunpack.c.l.b16 %v1600
    %v2113 = vunpack.c.l.b16 %v1601
    %v2114 = vunpack.c.l.b16 %v1602
    %v2115 = vunpack.c.l.b16 %v1603
    %v2116 = vunpack.c.l.b16 %v1604
    %v2117 = vunpack.c.l.b16 %v1605
    %v2118 = vunpack.c.l.b16 %v1606
    %v2119 = vunpack.c.l.b16 %v1607
    %v2120 = vunpack.c.l.b16 %v1608
    %v2121 = vunpack.c.l.b16 %v1609
    %v2122 = vunpack.c.l.b16 %v1610
    %v2123 = vunpack.c.l.b16 %v1611
    %v2124 = vunpack.c.l.b16 %v1612
    %v2125 = vunpack.c.l.b16 %v1613
    %v2126 = vunpack.c.l.b16 %v1614
    %v2127 = vunpack.c.l.b16 %v1615
    %v2128 = vunpack.c.l.b16 %v1616
    %v2129 = vunpack.c.l.b16 %v1617
    %v2130 = vunpack.c.l.b16 %v1618
    %v2131 = vunpack.c.l.b16 %v1619
    %v2132 = vunpack.c.l.b16 %v1620
    %v2133 = vunpack.c.l.b16 %v1621
    %v2134 = vunpack.c.l.b16 %v1622
    %v2135 = vunpack.c.l.b16 %v1623
    %v2136 = vunpack.c.l.b16 %v1624
    %v2137 = vunpack.c.l.b16 %v1625
    %v2138 = vunpack.c.l.b16 %v1626
    %v2139 = vunpack.c.l.b16 %v1627
    %v2140 = vunpack.c.l.b16 %v1628
    %v2141 = vunpack.c.l.b16 %v1629
    %v2142 = vunpack.c.l.b16 %v1630
    %v2143 = vunpack.c.l.b16 %v1631
    %v2144 = vunpack.c.l.b16 %v1632
    %v2145 = vunpack.c.l.b16 %v1633
    %v2146 = vunpack.c.l.b16 %v1634
    %v2147 = vunpack.c.l.b16 %v1635
    %v2148 = vunpack.c.l.b16 %v1636
    %v2149 = vunpack.c.l.b16 %v1637
    %v2150 = vunpack.c.l.b16 %v1638
    %v2151 = vunpack.c.l.b16 %v1639
    %v2152 = vunpack.c.l.b16 %v1640
    %v2153 = vunpack.c.l.b16 %v1641
    %v2154 = vunpack.c.l.b16 %v1642
    %v2155 = vunpack.c.l.b16 %v1643
    %v2156 = vunpack.c.l.b16 %v1644
    %v2157 = vunpack.c.l.b16 %v1645
    %v2158 = vunpack.c.l.b16 %v1646
    %v2159 = vunpack.c.l.b16 %v1647
    %v2160 = vunpack.c.l.b16 %v1648
    %v2161 = vunpack.c.l.b16 %v1649
    %v2162 = vunpack.c.l.b16 %v1650
    %v2163 = vunpack.c.l.b16 %v1651
    %v2164 = vunpack.c.l.b16 %v1652
    %v2165 = vunpack.c.l.b16 %v1653
    %v2166 = vunpack.c.l.b16 %v1654
    %v2167 = vunpack.c.l.b16 %v1655
    %v2168 = vunpack.c.l.b16 %v1656
    %v2169 = vunpack.c.l.b16 %v1657
    %v2170 = vunpack.c.l.b16 %v1658
    %v2171 = vunpack.c.l.b16 %v1659
    %v2172 = vunpack.c.l.b16 %v1660
    %v2173 = vunpack.c.l.b16 %v1661
    %v2174 = vunpack.c.l.b16 %v1662
    %v2175 = vunpack.c.l.b16 %v1663
    %v2176 = vunpack.c.l.b16 %v1664
    %v2177 = vunpack.c.l.b16 %v1665
    %v2178 = vunpack.c.l.b16 %v1666
    %v2179 = vunpack.c.l.b16 %v1667
    %v2180 = vunpack.c.l.b16 %v1668
    %v2181 = vunpack.c.l.b16 %v1669
    %v2182 = vunpack.c.l.b16 %v1670
    %v2183 = vunpack.c.l.b16 %v1671
    %v2184 = vunpack.c.l.b16 %v1672
    %v2185 = vunpack.c.l.b16 %v1673
    %v2186 = vunpack.c.l.b16 %v1674
    %v2187 = vunpack.c.l.b16 %v1675
    %v2188 = vunpack.c.l.b16 %v1676
    %v2189 = vunpack.c.l.b16 %v1677
    %v2190 = vunpack.c.l.b16 %v1678
    %v2191 = vunpack.c.l.b16 %v1679
    %v2192 = vunpack.c.l.b16 %v1680
    %v2193 = vunpack.c.l.b16 %v1681
    %v2194 = vunpack.c.l.b16 %v1682
    %v2195 = vunpack.c.l.b16 %v1683
    %v2196 = vunpack.c.l.b16 %v1684
    %v2197 = vunpack.c.l.b16 %v1685
    %v2198 = vunpack.c.l.b16 %v1686
    %v2199 = vunpack.c.l.b16 %v1687
    %v2200 = vunpack.c.l.b16 %v1688
    %v2201 = vunpack.c.l.b16 %v1689
    %v2202 = vunpack.c.l.b16 %v1690
    %v2203 = vunpack.c.l.b16 %v1691
    %v2204 = vunpack.c.l.b16 %v1692
    %v2205 = vunpack.c.l.b16 %v1693
    %v2206 = vunpack.c.l.b16 %v1694
    %v2207 = vunpack.c.l.b16 %v1695
    %v2208 = vunpack.c.l.b16 %v1696
    %v2209 = vunpack.c.l.b16 %v1697
    %v2210 = vunpack.c.l.b16 %v1698
    %v2211 = vunpack.c.l.b16 %v1699
    %v2212 = vunpack.c.l.b16 %v1700
    %v2213 = vunpack.c.l.b16 %v1701
    %v2214 = vunpack.c.l.b16 %v1702
    %v2215 = vunpack.c.l.b16 %v1703
    %v2216 = vunpack.c.l.b16 %v1704
    %v2217 = vunpack.c.l.b16 %v1705
    %v2218 = vunpack.c.l.b16 %v1706
    %v2219 = vunpack.c.l.b16 %v1707
    %v2220 = vunpack.c.l.b16 %v1708
    %v2221 = vunpack.c.l.b16 %v1709
    %v2222 = vunpack.c.l.b16 %v1710
    %v2223 = vunpack.c.l.b16 %v1711
    %v2224 = vunpack.c.l.b16 %v1712
    %v2225 = vunpack.c.l.b16 %v1713
    %v2226 = vunpack.c.l.b16 %v1714
    %v2227 = vunpack.c.l.b16 %v1715
    %v2228 = vunpack.c.l.b16 %v1716
    %v2229 = vunpack.c.l.b16 %v1717
    %v2230 = vunpack.c.l.b16 %v1718
    %v2231 = vunpack.c.l.b16 %v1719
    %v2232 = vunpack.c.l.b16 %v1720
    %v2233 = vunpack.c.l.b16 %v1721
    %v2234 = vunpack.c.l.b16 %v1722
    %v2235 = vpack.c.b16 %v1980, %v1979
    %v2236 = vpack.c.b16 %v1982, %v1981
    %v2237 = vpack.c.b16 %v1984, %v1983
    %v2238 = vpack.c.b16 %v1986, %v1985
    %v2239 = vpack.c.b16 %v1988, %v1987
    %v2240 = vpack.c.b16 %v1990, %v1989
    %v2241 = vpack.c.b16 %v1992, %v1991
    %v2242 = vpack.c.b16 %v1994, %v1993
    %v2243 = vpack.c.b16 %v1996, %v1995
    %v2244 = vpack.c.b16 %v1998, %v1997
    %v2245 = vpack.c.b16 %v2000, %v1999
    %v2246 = vpack.c.b16 %v2002, %v2001
    %v2247 = vpack.c.b16 %v2004, %v2003
    %v2248 = vpack.c.b16 %v2006, %v2005
    %v2249 = vpack.c.b16 %v2008, %v2007
    %v2250 = vpack.c.b16 %v2010, %v2009
    %v2251 = vpack.c.b16 %v2012, %v2011
    %v2252 = vpack.c.b16 %v2014, %v2013
    %v2253 = vpack.c.b16 %v2016, %v2015
    %v2254 = vpack.c.b16 %v2018, %v2017
    %v2255 = vpack.c.b16 %v2020, %v2019
    %v2256 = vpack.c.b16 %v2022, %v2021
    %v2257 = vpack.c.b16 %v2024, %v2023
    %v2258 = vpack.c.b16 %v2026, %v2025
    %v2259 = vpack.c.b16 %v2028, %v2027
    %v2260 = vpack.c.b16 %v2030, %v2029
    %v2261 = vpack.c.b16 %v2032, %v2031
    %v2262 = vpack.c.b16 %v2034, %v2033
    %v2263 = vpack.c.b16 %v2036, %v2035
    %v2264 = vpack.c.b16 %v2038, %v2037
    %v2265 = vpack.c.b16 %v2040, %v2039
    %v2266 = vpack.c.b16 %v2042, %v2041
    %v2267 = vpack.c.b16 %v2044, %v2043
    %v2268 = vpack.c.b16 %v2046, %v2045
    %v2269 = vpack.c.b16 %v2048, %v2047
    %v2270 = vpack.c.b16 %v2050, %v2049
    %v2271 = vpack.c.b16 %v2052, %v2051
    %v2272 = vpack.c.b16 %v2054, %v2053
    %v2273 = vpack.c.b16 %v2056, %v2055
    %v2274 = vpack.c.b16 %v2058, %v2057
    %v2275 = vpack.c.b16 %v2060, %v2059
    %v2276 = vpack.c.b16 %v2062, %v2061
    %v2277 = vpack.c.b16 %v2064, %v2063
    %v2278 = vpack.c.b16 %v2066, %v2065
    %v2279 = vpack.c.b16 %v2068, %v2067
    %v2280 = vpack.c.b16 %v2070, %v2069
    %v2281 = vpack.c.b16 %v2072, %v2071
    %v2282 = vpack.c.b16 %v2074, %v2073
    %v2283 = vpack.c.b16 %v2076, %v2075
    %v2284 = vpack.c.b16 %v2078, %v2077
    %v2285 = vpack.c.b16 %v2080, %v2079
    %v2286 = vpack.c.b16 %v2082, %v2081
    %v2287 = vpack.c.b16 %v2084, %v2083
    %v2288 = vpack.c.b16 %v2086, %v2085
    %v2289 = vpack.c.b16 %v2088, %v2087
    %v2290 = vpack.c.b16 %v2090, %v2089
    %v2291 = vpack.c.b16 %v2092, %v2091
    %v2292 = vpack.c.b16 %v2094, %v2093
    %v2293 = vpack.c.b16 %v2096, %v2095
    %v2294 = vpack.c.b16 %v2098, %v2097
    %v2295 = vpack.c.b16 %v2100, %v2099
    %v2296 = vpack.c.b16 %v2102, %v2101
    %v2297 = vpack.c.b16 %v2104, %v2103
    %v2298 = vpack.c.b16 %v2106, %v2105
    %v2299 = vpack.c.b16 %v2108, %v2107
    %v2300 = vpack.c.b16 %v2110, %v2109
    %v2301 = vpack.c.b16 %v2112, %v2111
    %v2302 = vpack.c.b16 %v2114, %v2113
    %v2303 = vpack.c.b16 %v2116, %v2115
    %v2304 = vpack.c.b16 %v2118, %v2117
    %v2305 = vpack.c.b16 %v2120, %v2119
    %v2306 = vpack.c.b16 %v2122, %v2121
    %v2307 = vpack.c.b16 %v2124, %v2123
    %v2308 = vpack.c.b16 %v2126, %v2125
    %v2309 = vpack.c.b16 %v2128, %v2127
    %v2310 = vpack.c.b16 %v2130, %v2129
    %v2311 = vpack.c.b16 %v2132, %v2131
    %v2312 = vpack.c.b16 %v2134, %v2133
    %v2313 = vpack.c.b16 %v2136, %v2135
    %v2314 = vpack.c.b16 %v2138, %v2137
    %v2315 = vpack.c.b16 %v2140, %v2139
    %v2316 = vpack.c.b16 %v2142, %v2141
    %v2317 = vpack.c.b16 %v2144, %v2143
    %v2318 = vpack.c.b16 %v2146, %v2145
    %v2319 = vpack.c.b16 %v2148, %v2147
    %v2320 = vpack.c.b16 %v2150, %v2149
    %v2321 = vpack.c.b16 %v2152, %v2151
    %v2322 = vpack.c.b16 %v2154, %v2153
    %v2323 = vpack.c.b16 %v2156, %v2155
    %v2324 = vpack.c.b16 %v2158, %v2157
    %v2325 = vpack.c.b16 %v2160, %v2159
    %v2326 = vpack.c.b16 %v2162, %v2161
    %v2327 = vpack.c.b16 %v2164, %v2163
    %v2328 = vpack.c.b16 %v2166, %v2165
    %v2329 = vpack.c.b16 %v2168, %v2167
    %v2330 = vpack.c.b16 %v2170, %v2169
    %v2331 = vpack.c.b16 %v2172, %v2171
    %v2332 = vpack.c.b16 %v2174, %v2173
    %v2333 = vpack.c.b16 %v2176, %v2175
    %v2334 = vpack.c.b16 %v2178, %v2177
    %v2335 = vpack.c.b16 %v2180, %v2179
    %v2336 = vpack.c.b16 %v2182, %v2181
    %v2337 = vpack.c.b16 %v2184, %v2183
    %v2338 = vpack.c.b16 %v2186, %v2185
    %v2339 = vpack.c.b16 %v2188, %v2187
    %v2340 = vpack.c.b16 %v2190, %v2189
    %v2341 = vpack.c.b16 %v2192, %v2191
    %v2342 = vpack.c.b16 %v2194, %v2193
    %v2343 = vpack.c.b16 %v2196, %v2195
    %v2344 = vpack.c.b16 %v2198, %v2197
    %v2345 = vpack.c.b16 %v2200, %v2199
    %v2346 = vpack.c.b16 %v2202, %v2201
    %v2347 = vpack.c.b16 %v2204, %v2203
    %v2348 = vpack.c.b16 %v2206, %v2205
    %v2349 = vpack.c.b16 %v2208, %v2207
    %v2350 = vpack.c.b16 %v2210, %v2209
    %v2351 = vpack.c.b16 %v2212, %v2211
    %v2352 = vpack.c.b16 %v2214, %v2213
    %v2353 = vpack.c.b16 %v2216, %v2215
    %v2354 = vpack.c.b16 %v2218, %v2217
    %v2355 = vpack.c.b16 %v2220, %v2219
    %v2356 = vpack.c.b16 %v2222, %v2221
    %v2357 = vpack.c.b16 %v2224, %v2223
    %v2358 = vpack.c.b16 %v2226, %v2225
    %v2359 = vpack.c.b16 %v2228, %v2227
    %v2360 = vpack.c.b16 %v2230, %v2229
    %v2361 = vpack.c.b16 %v2232, %v2231
    %v2362 = vpack.c.b16 %v2234, %v2233
    %2491 = vmatprep.subr.bf16.mxu0 0
    %2492 = vmatpush1.bf16.msra.mxu0 %v2242
    %2493 = vmatprep.subr.bf16.mxu0 0
    %2494 = vmatpush1.bf16.msra.mxu0 %v2241
    %2495 = vmatprep.subr.bf16.mxu0 0
    %2496 = vmatpush1.bf16.msra.mxu0 %v2240
    %2497 = vmatprep.subr.bf16.mxu0 0
    %2498 = vmatpush1.bf16.msra.mxu0 %v2239
    %2499 = vmatprep.subr.bf16.mxu0 0
    %2500 = vmatpush1.bf16.msra.mxu0 %v2238
    %2501 = vmatprep.subr.bf16.mxu0 0
    %2502 = vmatpush1.bf16.msra.mxu0 %v2237
    %2503 = vmatprep.subr.bf16.mxu0 0
    %2504 = vmatpush1.bf16.msra.mxu0 %v2236
    %2505 = vmatprep.subr.bf16.mxu0 0
    %2506 = vmatpush1.bf16.msra.mxu0 %v2235
    %2507 = vmatprep.subr.bf16.mxu0 0
    %2508 = vmatpush2.bf16.msra.mxu0 %v2250
    %2509 = vmatprep.subr.bf16.mxu0 0
    %2510 = vmatpush2.bf16.msra.mxu0 %v2249
    %2511 = vmatprep.subr.bf16.mxu0 0
    %2512 = vmatpush2.bf16.msra.mxu0 %v2248
    %2513 = vmatprep.subr.bf16.mxu0 0
    %2514 = vmatpush2.bf16.msra.mxu0 %v2247
    %2515 = vmatprep.subr.bf16.mxu0 0
    %2516 = vmatpush2.bf16.msra.mxu0 %v2246
    %2517 = vmatprep.subr.bf16.mxu0 0
    %2518 = vmatpush2.bf16.msra.mxu0 %v2245
    %2519 = vmatprep.subr.bf16.mxu0 0
    %2520 = vmatpush2.bf16.msra.mxu0 %v2244
    %2521 = vmatprep.subr.bf16.mxu0 0
    %2522 = vmatpush2.bf16.msra.mxu0 %v2243
    %2523 = vmatprep.mubr.bf16.mxu0 %v1452
    %2524 = vmatmul.mubr.bf16.gmra.mxu0 %v1451
    %v2525 = vpop.f32.mrf.mxu0
    %v2526 = vadd.f32 0.0, %v2525
    %v2527 = vpop.f32.mrf.mxu0
    %v2528 = vpop.f32.mrf.mxu0
    %v2529 = vpop.f32.mrf.mxu0
    %2530 = vdwg.mxu0
    %2531 = vmatprep.subr.bf16.mxu0 0
    %2532 = vmatpush1.bf16.msra.mxu0 %v2258
    %2533 = vmatprep.subr.bf16.mxu0 0
    %2534 = vmatpush1.bf16.msra.mxu0 %v2257
    %2535 = vmatprep.subr.bf16.mxu0 0
    %2536 = vmatpush1.bf16.msra.mxu0 %v2256
    %2537 = vmatprep.subr.bf16.mxu0 0
    %2538 = vmatpush1.bf16.msra.mxu0 %v2255
    %2539 = vmatprep.subr.bf16.mxu0 0
    %2540 = vmatpush1.bf16.msra.mxu0 %v2254
    %2541 = vmatprep.subr.bf16.mxu0 0
    %2542 = vmatpush1.bf16.msra.mxu0 %v2253
    %2543 = vmatprep.subr.bf16.mxu0 0
    %2544 = vmatpush1.bf16.msra.mxu0 %v2252
    %2545 = vmatprep.subr.bf16.mxu0 0
    %2546 = vmatpush1.bf16.msra.mxu0 %v2251
    %2547 = vmatprep.subr.bf16.mxu0 0
    %2548 = vmatpush2.bf16.msra.mxu0 %v2266
    %2549 = vmatprep.subr.bf16.mxu0 0
    %2550 = vmatpush2.bf16.msra.mxu0 %v2265
    %2551 = vmatprep.subr.bf16.mxu0 0
    %2552 = vmatpush2.bf16.msra.mxu0 %v2264
    %2553 = vmatprep.subr.bf16.mxu0 0
    %2554 = vmatpush2.bf16.msra.mxu0 %v2263
    %2555 = vmatprep.subr.bf16.mxu0 0
    %2556 = vmatpush2.bf16.msra.mxu0 %v2262
    %2557 = vmatprep.subr.bf16.mxu0 0
    %2558 = vmatpush2.bf16.msra.mxu0 %v2261
    %2559 = vmatprep.subr.bf16.mxu0 0
    %2560 = vmatpush2.bf16.msra.mxu0 %v2260
    %2561 = vmatprep.subr.bf16.mxu0 0
    %2562 = vmatpush2.bf16.msra.mxu0 %v2259
    %2563 = vmatprep.mubr.bf16.mxu0 %v1454
    %2564 = vmatmul.mubr.bf16.gmra.mxu0 %v1453
    %v2565 = vpop.f32.mrf.mxu0
    %v2566 = vadd.f32 %v2526, %v2565
    %v2567 = vpop.f32.mrf.mxu0
    %v2568 = vpop.f32.mrf.mxu0
    %v2569 = vpop.f32.mrf.mxu0
    %2570 = vdwg.mxu0
    %2571 = vmatprep.subr.bf16.mxu0 0
    %2572 = vmatpush1.bf16.msra.mxu0 %v2274
    %2573 = vmatprep.subr.bf16.mxu0 0
    %2574 = vmatpush1.bf16.msra.mxu0 %v2273
    %2575 = vmatprep.subr.bf16.mxu0 0
    %2576 = vmatpush1.bf16.msra.mxu0 %v2272
    %2577 = vmatprep.subr.bf16.mxu0 0
    %2578 = vmatpush1.bf16.msra.mxu0 %v2271
    %2579 = vmatprep.subr.bf16.mxu0 0
    %2580 = vmatpush1.bf16.msra.mxu0 %v2270
    %2581 = vmatprep.subr.bf16.mxu0 0
    %2582 = vmatpush1.bf16.msra.mxu0 %v2269
    %2583 = vmatprep.subr.bf16.mxu0 0
    %2584 = vmatpush1.bf16.msra.mxu0 %v2268
    %2585 = vmatprep.subr.bf16.mxu0 0
    %2586 = vmatpush1.bf16.msra.mxu0 %v2267
    %2587 = vmatprep.subr.bf16.mxu0 0
    %2588 = vmatpush2.bf16.msra.mxu0 %v2282
    %2589 = vmatprep.subr.bf16.mxu0 0
    %2590 = vmatpush2.bf16.msra.mxu0 %v2281
    %2591 = vmatprep.subr.bf16.mxu0 0
    %2592 = vmatpush2.bf16.msra.mxu0 %v2280
    %2593 = vmatprep.subr.bf16.mxu0 0
    %2594 = vmatpush2.bf16.msra.mxu0 %v2279
    %2595 = vmatprep.subr.bf16.mxu0 0
    %2596 = vmatpush2.bf16.msra.mxu0 %v2278
    %2597 = vmatprep.subr.bf16.mxu0 0
    %2598 = vmatpush2.bf16.msra.mxu0 %v2277
    %2599 = vmatprep.subr.bf16.mxu0 0
    %2600 = vmatpush2.bf16.msra.mxu0 %v2276
    %2601 = vmatprep.subr.bf16.mxu0 0
    %2602 = vmatpush2.bf16.msra.mxu0 %v2275
    %2603 = vmatprep.mubr.bf16.mxu0 %v1456
    %2604 = vmatmul.mubr.bf16.gmra.mxu0 %v1455
    %v2605 = vpop.f32.mrf.mxu0
    %v2606 = vadd.f32 %v2566, %v2605
    %v2607 = vpop.f32.mrf.mxu0
    %v2608 = vpop.f32.mrf.mxu0
    %v2609 = vpop.f32.mrf.mxu0
    %2610 = vdwg.mxu0
    %2611 = vmatprep.subr.bf16.mxu0 0
    %2612 = vmatpush1.bf16.msra.mxu0 %v2290
    %2613 = vmatprep.subr.bf16.mxu0 0
    %2614 = vmatpush1.bf16.msra.mxu0 %v2289
    %2615 = vmatprep.subr.bf16.mxu0 0
    %2616 = vmatpush1.bf16.msra.mxu0 %v2288
    %2617 = vmatprep.subr.bf16.mxu0 0
    %2618 = vmatpush1.bf16.msra.mxu0 %v2287
    %2619 = vmatprep.subr.bf16.mxu0 0
    %2620 = vmatpush1.bf16.msra.mxu0 %v2286
    %2621 = vmatprep.subr.bf16.mxu0 0
    %2622 = vmatpush1.bf16.msra.mxu0 %v2285
    %2623 = vmatprep.subr.bf16.mxu0 0
    %2624 = vmatpush1.bf16.msra.mxu0 %v2284
    %2625 = vmatprep.subr.bf16.mxu0 0
    %2626 = vmatpush1.bf16.msra.mxu0 %v2283
    %2627 = vmatprep.subr.bf16.mxu0 0
    %2628 = vmatpush2.bf16.msra.mxu0 %v2298
    %2629 = vmatprep.subr.bf16.mxu0 0
    %2630 = vmatpush2.bf16.msra.mxu0 %v2297
    %2631 = vmatprep.subr.bf16.mxu0 0
    %2632 = vmatpush2.bf16.msra.mxu0 %v2296
    %2633 = vmatprep.subr.bf16.mxu0 0
    %2634 = vmatpush2.bf16.msra.mxu0 %v2295
    %2635 = vmatprep.subr.bf16.mxu0 0
    %2636 = vmatpush2.bf16.msra.mxu0 %v2294
    %2637 = vmatprep.subr.bf16.mxu0 0
    %2638 = vmatpush2.bf16.msra.mxu0 %v2293
    %2639 = vmatprep.subr.bf16.mxu0 0
    %2640 = vmatpush2.bf16.msra.mxu0 %v2292
    %2641 = vmatprep.subr.bf16.mxu0 0
    %2642 = vmatpush2.bf16.msra.mxu0 %v2291
    %2643 = vmatprep.mubr.bf16.mxu0 %v1458
    %2644 = vmatmul.mubr.bf16.gmra.mxu0 %v1457
    %v2645 = vpop.f32.mrf.mxu0
    %v2646 = vadd.f32 %v2606, %v2645
    %v2647 = vpop.f32.mrf.mxu0
    %v2648 = vpop.f32.mrf.mxu0
    %v2649 = vpop.f32.mrf.mxu0
    %2650 = vdwg.mxu0
    %2651 = vmatprep.subr.bf16.mxu0 0
    %2652 = vmatpush1.bf16.msra.mxu0 %v2306
    %2653 = vmatprep.subr.bf16.mxu0 0
    %2654 = vmatpush1.bf16.msra.mxu0 %v2305
    %2655 = vmatprep.subr.bf16.mxu0 0
    %2656 = vmatpush1.bf16.msra.mxu0 %v2304
    %2657 = vmatprep.subr.bf16.mxu0 0
    %2658 = vmatpush1.bf16.msra.mxu0 %v2303
    %2659 = vmatprep.subr.bf16.mxu0 0
    %2660 = vmatpush1.bf16.msra.mxu0 %v2302
    %2661 = vmatprep.subr.bf16.mxu0 0
    %2662 = vmatpush1.bf16.msra.mxu0 %v2301
    %2663 = vmatprep.subr.bf16.mxu0 0
    %2664 = vmatpush1.bf16.msra.mxu0 %v2300
    %2665 = vmatprep.subr.bf16.mxu0 0
    %2666 = vmatpush1.bf16.msra.mxu0 %v2299
    %2667 = vmatprep.subr.bf16.mxu0 0
    %2668 = vmatpush2.bf16.msra.mxu0 %v2314
    %2669 = vmatprep.subr.bf16.mxu0 0
    %2670 = vmatpush2.bf16.msra.mxu0 %v2313
    %2671 = vmatprep.subr.bf16.mxu0 0
    %2672 = vmatpush2.bf16.msra.mxu0 %v2312
    %2673 = vmatprep.subr.bf16.mxu0 0
    %2674 = vmatpush2.bf16.msra.mxu0 %v2311
    %2675 = vmatprep.subr.bf16.mxu0 0
    %2676 = vmatpush2.bf16.msra.mxu0 %v2310
    %2677 = vmatprep.subr.bf16.mxu0 0
    %2678 = vmatpush2.bf16.msra.mxu0 %v2309
    %2679 = vmatprep.subr.bf16.mxu0 0
    %2680 = vmatpush2.bf16.msra.mxu0 %v2308
    %2681 = vmatprep.subr.bf16.mxu0 0
    %2682 = vmatpush2.bf16.msra.mxu0 %v2307
    %2683 = vmatprep.mubr.bf16.mxu0 %v1460
    %2684 = vmatmul.mubr.bf16.gmra.mxu0 %v1459
    %v2685 = vpop.f32.mrf.mxu0
    %v2686 = vadd.f32 %v2646, %v2685
    %v2687 = vpop.f32.mrf.mxu0
    %v2688 = vpop.f32.mrf.mxu0
    %v2689 = vpop.f32.mrf.mxu0
    %2690 = vdwg.mxu0
    %2691 = vmatprep.subr.bf16.mxu0 0
    %2692 = vmatpush1.bf16.msra.mxu0 %v2322
    %2693 = vmatprep.subr.bf16.mxu0 0
    %2694 = vmatpush1.bf16.msra.mxu0 %v2321
    %2695 = vmatprep.subr.bf16.mxu0 0
    %2696 = vmatpush1.bf16.msra.mxu0 %v2320
    %2697 = vmatprep.subr.bf16.mxu0 0
    %2698 = vmatpush1.bf16.msra.mxu0 %v2319
    %2699 = vmatprep.subr.bf16.mxu0 0
    %2700 = vmatpush1.bf16.msra.mxu0 %v2318
    %2701 = vmatprep.subr.bf16.mxu0 0
    %2702 = vmatpush1.bf16.msra.mxu0 %v2317
    %2703 = vmatprep.subr.bf16.mxu0 0
    %2704 = vmatpush1.bf16.msra.mxu0 %v2316
    %2705 = vmatprep.subr.bf16.mxu0 0
    %2706 = vmatpush1.bf16.msra.mxu0 %v2315
    %2707 = vmatprep.subr.bf16.mxu0 0
    %2708 = vmatpush2.bf16.msra.mxu0 %v2330
    %2709 = vmatprep.subr.bf16.mxu0 0
    %2710 = vmatpush2.bf16.msra.mxu0 %v2329
    %2711 = vmatprep.subr.bf16.mxu0 0
    %2712 = vmatpush2.bf16.msra.mxu0 %v2328
    %2713 = vmatprep.subr.bf16.mxu0 0
    %2714 = vmatpush2.bf16.msra.mxu0 %v2327
    %2715 = vmatprep.subr.bf16.mxu0 0
    %2716 = vmatpush2.bf16.msra.mxu0 %v2326
    %2717 = vmatprep.subr.bf16.mxu0 0
    %2718 = vmatpush2.bf16.msra.mxu0 %v2325
    %2719 = vmatprep.subr.bf16.mxu0 0
    %2720 = vmatpush2.bf16.msra.mxu0 %v2324
    %2721 = vmatprep.subr.bf16.mxu0 0
    %2722 = vmatpush2.bf16.msra.mxu0 %v2323
    %2723 = vmatprep.mubr.bf16.mxu0 %v1462
    %2724 = vmatmul.mubr.bf16.gmra.mxu0 %v1461
    %v2725 = vpop.f32.mrf.mxu0
    %v2726 = vadd.f32 %v2686, %v2725
    %v2727 = vpop.f32.mrf.mxu0
    %v2728 = vpop.f32.mrf.mxu0
    %v2729 = vpop.f32.mrf.mxu0
    %2730 = vdwg.mxu0
    %2731 = vmatprep.subr.bf16.mxu0 0
    %2732 = vmatpush1.bf16.msra.mxu0 %v2338
    %2733 = vmatprep.subr.bf16.mxu0 0
    %2734 = vmatpush1.bf16.msra.mxu0 %v2337
    %2735 = vmatprep.subr.bf16.mxu0 0
    %2736 = vmatpush1.bf16.msra.mxu0 %v2336
    %2737 = vmatprep.subr.bf16.mxu0 0
    %2738 = vmatpush1.bf16.msra.mxu0 %v2335
    %2739 = vmatprep.subr.bf16.mxu0 0
    %2740 = vmatpush1.bf16.msra.mxu0 %v2334
    %2741 = vmatprep.subr.bf16.mxu0 0
    %2742 = vmatpush1.bf16.msra.mxu0 %v2333
    %2743 = vmatprep.subr.bf16.mxu0 0
    %2744 = vmatpush1.bf16.msra.mxu0 %v2332
    %2745 = vmatprep.subr.bf16.mxu0 0
    %2746 = vmatpush1.bf16.msra.mxu0 %v2331
    %2747 = vmatprep.subr.bf16.mxu0 0
    %2748 = vmatpush2.bf16.msra.mxu0 %v2346
    %2749 = vmatprep.subr.bf16.mxu0 0
    %2750 = vmatpush2.bf16.msra.mxu0 %v2345
    %2751 = vmatprep.subr.bf16.mxu0 0
    %2752 = vmatpush2.bf16.msra.mxu0 %v2344
    %2753 = vmatprep.subr.bf16.mxu0 0
    %2754 = vmatpush2.bf16.msra.mxu0 %v2343
    %2755 = vmatprep.subr.bf16.mxu0 0
    %2756 = vmatpush2.bf16.msra.mxu0 %v2342
    %2757 = vmatprep.subr.bf16.mxu0 0
    %2758 = vmatpush2.bf16.msra.mxu0 %v2341
    %2759 = vmatprep.subr.bf16.mxu0 0
    %2760 = vmatpush2.bf16.msra.mxu0 %v2340
    %2761 = vmatprep.subr.bf16.mxu0 0
    %2762 = vmatpush2.bf16.msra.mxu0 %v2339
    %2763 = vmatprep.mubr.bf16.mxu0 %v1464
    %2764 = vmatmul.mubr.bf16.gmra.mxu0 %v1463
    %v2765 = vpop.f32.mrf.mxu0
    %v2766 = vadd.f32 %v2726, %v2765
    %v2767 = vpop.f32.mrf.mxu0
    %v2768 = vpop.f32.mrf.mxu0
    %v2769 = vpop.f32.mrf.mxu0
    %2770 = vdwg.mxu0
    %2771 = vmatprep.subr.bf16.mxu0 0
    %2772 = vmatpush1.bf16.msra.mxu0 %v2354
    %2773 = vmatprep.subr.bf16.mxu0 0
    %2774 = vmatpush1.bf16.msra.mxu0 %v2353
    %2775 = vmatprep.subr.bf16.mxu0 0
    %2776 = vmatpush1.bf16.msra.mxu0 %v2352
    %2777 = vmatprep.subr.bf16.mxu0 0
    %2778 = vmatpush1.bf16.msra.mxu0 %v2351
    %2779 = vmatprep.subr.bf16.mxu0 0
    %2780 = vmatpush1.bf16.msra.mxu0 %v2350
    %2781 = vmatprep.subr.bf16.mxu0 0
    %2782 = vmatpush1.bf16.msra.mxu0 %v2349
    %2783 = vmatprep.subr.bf16.mxu0 0
    %2784 = vmatpush1.bf16.msra.mxu0 %v2348
    %2785 = vmatprep.subr.bf16.mxu0 0
    %2786 = vmatpush1.bf16.msra.mxu0 %v2347
    %2787 = vmatprep.subr.bf16.mxu0 0
    %2788 = vmatpush2.bf16.msra.mxu0 %v2362
    %2789 = vmatprep.subr.bf16.mxu0 0
    %2790 = vmatpush2.bf16.msra.mxu0 %v2361
    %2791 = vmatprep.subr.bf16.mxu0 0
    %2792 = vmatpush2.bf16.msra.mxu0 %v2360
    %2793 = vmatprep.subr.bf16.mxu0 0
    %2794 = vmatpush2.bf16.msra.mxu0 %v2359
    %2795 = vmatprep.subr.bf16.mxu0 0
    %2796 = vmatpush2.bf16.msra.mxu0 %v2358
    %2797 = vmatprep.subr.bf16.mxu0 0
    %2798 = vmatpush2.bf16.msra.mxu0 %v2357
    %2799 = vmatprep.subr.bf16.mxu0 0
    %2800 = vmatpush2.bf16.msra.mxu0 %v2356
    %2801 = vmatprep.subr.bf16.mxu0 0
    %2802 = vmatpush2.bf16.msra.mxu0 %v2355
    %2803 = vmatprep.mubr.bf16.mxu0 %v1466
    %2804 = vmatmul.mubr.bf16.gmra.mxu0 %v1465
    %v2805 = vpop.f32.mrf.mxu0
    %v2806 = vadd.f32 %v2766, %v2805
    %v2807 = vpop.f32.mrf.mxu0
    %v2808 = vpop.f32.mrf.mxu0
    %v2809 = vpop.f32.mrf.mxu0
    %2810 = vdwg.mxu0
    %v2811 = vadd.f32 %v253, %v2806
    %v2812 = vld [vmem:[%s8] sm:$0x1]
    %v2814 = vlaneseq
    %v2815 = vshrl.u32 %v2814, 7
    %v2816 = vsub.s32 0, %v2815
    %v2817 = vrot.slane %v2812, %v2816
    %v2819 = vadd.f32 %v2811, %v2817
    %2820 = vadd.xlane.f32.xlu0 %v2819
    %v2821 = vpop.xlane.xlu0 %2820
    %v2822 = vmul.f32 %v2821, %v226
    %v2823 = vmul.f32 %v2819, %v2819
    %2824 = vadd.xlane.f32.xlu0 %v2823
    %v2825 = vpop.xlane.xlu0 %2824
    %v2826 = vmul.f32 %v2825, %v226
    %v2827 = vmul.f32 %v2822, %v2822
    %v2828 = vsub.f32 %v2826, %v2827
    %v2829 = vsub.f32 %v2819, %v2822
    %v2830 = vadd.f32 %v2828, 1e-05
    %v2831 = vrsqrt.pop %v2830
    %v2832 = vmul.f32 %v2829, %v2831
    %v2833 = vld [vmem:[%s9] sm:$0x1]
    %v2835 = vlaneseq
    %v2836 = vshrl.u32 %v2835, 7
    %v2837 = vsub.s32 0, %v2836
    %v2838 = vrot.slane %v2833, %v2837
    %v2840 = vmul.f32 %v2832, %v2838
    %v2841 = vld [vmem:[%s10] sm:$0x1]
    %v2843 = vlaneseq
    %v2844 = vshrl.u32 %v2843, 7
    %v2845 = vsub.s32 0, %v2844
    %v2846 = vrot.slane %v2841, %v2845
    %v2848 = vadd.f32 %v2840, %v2846
    %v2849 = vld [vmem:[%s11] sm:$0x1]
    %v2850 = vld [vmem:[#allocation2] sm:$0x1]
    %2852 = vset.pattern.permute.xlu0 0
    %2853 = vperm.xlu0 %2852, %v2850
    %v2854 = vpop.permute.xlu0 %2853
    %v2856 = vlaneseq
    %v2857 = vshrl.u32 %v2856, 7
    %v2858 = vsub.s32 0, %v2857
    %v2859 = vrot.slane %v2854, %v2858
    %2860 = vmatprep.subr.mxu0 0.0
    %2861 = vmatpush1.xpose.msra.mxu0 0.0
    %2862 = vmatprep.subr.mxu0 0.0
    %2863 = vmatpush1.xpose.msra.mxu0 0.0
    %2864 = vmatprep.subr.mxu0 0.0
    %2865 = vmatpush1.xpose.msra.mxu0 0.0
    %2866 = vmatprep.subr.mxu0 0.0
    %2867 = vmatpush1.xpose.msra.mxu0 0.0
    %2868 = vmatprep.subr.mxu0 0.0
    %2869 = vmatpush1.xpose.msra.mxu0 0.0
    %2870 = vmatprep.subr.mxu0 0.0
    %2871 = vmatpush1.xpose.msra.mxu0 0.0
    %2872 = vmatprep.subr.mxu0 0.0
    %2873 = vmatpush1.xpose.msra.mxu0 0.0
    %2874 = vmatprep.subr.mxu0 0.0
    %2875 = vmatpush1.xpose.msra.mxu0 0.0
    %2876 = vmatprep.subr.mxu0 0.0
    %2877 = vmatpush1.xpose.msra.mxu0 0.0
    %2878 = vmatprep.subr.mxu0 0.0
    %2879 = vmatpush1.xpose.msra.mxu0 0.0
    %2880 = vmatprep.subr.mxu0 0.0
    %2881 = vmatpush1.xpose.msra.mxu0 0.0
    %2882 = vmatprep.subr.mxu0 0.0
    %2883 = vmatpush1.xpose.msra.mxu0 0.0
    %2884 = vmatprep.subr.mxu0 0.0
    %2885 = vmatpush1.xpose.msra.mxu0 0.0
    %2886 = vmatprep.subr.mxu0 0.0
    %2887 = vmatpush1.xpose.msra.mxu0 0.0
    %2888 = vmatprep.subr.mxu0 0.0
    %2889 = vmatpush1.xpose.msra.mxu0 0.0
    %2890 = vmatprep.subr.mxu0 0.0
    %2891 = vmatpush1.xpose.msra.mxu0 %v2848
    %2892 = vmatprep.subr.mxu0 0.0
    %2893 = vmatpush2.xpose.msra.mxu0 0.0
    %2894 = vmatprep.subr.mxu0 0.0
    %2895 = vmatpush2.xpose.msra.mxu0 0.0
    %2896 = vmatprep.subr.mxu0 0.0
    %2897 = vmatpush2.xpose.msra.mxu0 0.0
    %2898 = vmatprep.subr.mxu0 0.0
    %2899 = vmatpush2.xpose.msra.mxu0 0.0
    %2900 = vmatprep.subr.mxu0 0.0
    %2901 = vmatpush2.xpose.msra.mxu0 0.0
    %2902 = vmatprep.subr.mxu0 0.0
    %2903 = vmatpush2.xpose.msra.mxu0 0.0
    %2904 = vmatprep.subr.mxu0 0.0
    %2905 = vmatpush2.xpose.msra.mxu0 0.0
    %2906 = vmatprep.subr.mxu0 0.0
    %2907 = vmatpush2.xpose.msra.mxu0 0.0
    %2908 = vmatprep.subr.mxu0 0.0
    %2909 = vmatpush2.xpose.msra.mxu0 0.0
    %2910 = vmatprep.subr.mxu0 0.0
    %2911 = vmatpush2.xpose.msra.mxu0 0.0
    %2912 = vmatprep.subr.mxu0 0.0
    %2913 = vmatpush2.xpose.msra.mxu0 0.0
    %2914 = vmatprep.subr.mxu0 0.0
    %2915 = vmatpush2.xpose.msra.mxu0 0.0
    %2916 = vmatprep.subr.mxu0 0.0
    %2917 = vmatpush2.xpose.msra.mxu0 0.0
    %2918 = vmatprep.subr.mxu0 0.0
    %2919 = vmatpush2.xpose.msra.mxu0 0.0
    %2920 = vmatprep.subr.mxu0 0.0
    %2921 = vmatpush2.xpose.msra.mxu0 0.0
    %2922 = vmatprep.subr.mxu0 0.0
    %2923 = vmatpush2.xpose.msra.mxu0 0.0
    %2924 = vmatprep.mubr.f32.mxu0 0.0
    %2925 = vmatmul.mubr.f32.gmra.mxu0 %v2849
    %v2926 = vpop.f32.mrf.mxu0
    %v2927 = vadd.f32 %v2859, %v2926
    %v2928 = vpop.f32.mrf.mxu0
    %2929 = vdwg.mxu0
    %vm2930 = vcmask 57344
    %2931 = vst.msk [vmem:[#allocation12] sm:$0x1] %vm2930, %v2927
    // Predicated region
    $region74: #{tpu_custom_call.1} parent=1 // pred_check
      _
    $region75: #{tpu_custom_call.1} parent=1 // pred_check_branch
      %2933 = sbr.rel (0) target = $region77
    $region76: #{tpu_custom_call.1} parent=1 // pred_region
      %s2935 = ssub.s32 16, 16
      %2936 = vsyncadd [#allocation5], %s2935
      %s2938 = sshll.u32 [#allocation12], 4
      %s2939 = int_to_ptr.vmem [resolvable:$true] %s2938
      %2941 = dma.vmem_to_hbm [thread:$0]  %s2939, 16, %s13, [#allocation5]
    $region77: #{tpu_custom_call.1} parent=1 // pred_fallthru
      _
    // Predicated region
    $region78: #{tpu_custom_call.1} parent=1 // pred_check
      _
    $region79: #{tpu_custom_call.1} parent=1 // pred_check_branch
      %2943 = sbr.rel (0) target = $region81
    $region80: #{tpu_custom_call.1} parent=1 // pred_region
      %2944 = dma.done [#allocation5], 16
    $region81: #{tpu_custom_call.1} parent=1 // pred_fallthru
      _
    %2945 = vsyncpa [#allocation4], 1
    %2946 = vsyncpa [#allocation7], 1
    %2947 = vsyncpa [#allocation10], 1
    %2948 = vsyncpa [#allocation5], 1

</llo_original>
